<compile_context>
chip_gen: v7x
topology: tpu7x:2x2x1
jax: 0.10.0
libtpu: 0.0.40
codegen_flags: <defaults>
</compile_context>

<pallas_src>
import functools

import jax
import jax.numpy as jnp
import numpy as np
from jax import lax
from jax.experimental import pallas as pl
from jax.experimental.pallas import tpu as pltpu

LANE = 128
SUBLANE = 8
NH = 2 * LANE  # fused head slab: cols [0:128] actor softmax, col 128 critic value


def _round_up(x, m):
    return ((x + m - 1) // m) * m


def _lstm_ac_kernel(x_ref, w_xh_ref, w_hh_ref, b_ref, wh_ref, bh_ref,
                    h0_ref, c0_ref,
                    head_ref, hn_ref, cn_ref, xg_ref,
                    *, use_bf16, unroll):
    """Whole-sequence LSTM + fused actor/critic heads in one invocation.

    x_ref   : (T, Bp, Ip)   time-major, zero-padded input
    w_xh_ref: (Ip, 4*Hp)    W_ih^T, gate blocks (i,f,g,o) padded to Hp cols each
    w_hh_ref: (Hp, 4*Hp)    W_hh^T, same gate layout
    b_ref   : (1, 4*Hp)     b_ih + b_hh (padded)
    wh_ref  : (Hp, 2*LANE)  fused actor(cols 0:2) + critic(col 128) weights
    bh_ref  : (1, 2*LANE)   fused head bias (-1e30 on padded actor logit cols)
    h0_ref/c0_ref : (Bp, Hp) initial hidden state
    outputs : head (Bp, 2*LANE), h_n (Bp, Hp), c_n (Bp, Hp)
    scratch : xg_ref (T, Bp, 4*Hp) precomputed input-projection gates (f32)
    """
    T, Bp, Ip = x_ref.shape
    Hp = w_hh_ref.shape[0]
    mxu_dtype = jnp.bfloat16 if use_bf16 else jnp.float32

    # ---- 1) Input projection for every timestep in a single MXU matmul. ----
    # (T, Bp, Ip) -> (T*Bp, Ip) is a free reshape (Bp % 8 == 0, Ip % 128 == 0).
    x_all = x_ref[...].reshape(T * Bp, Ip).astype(mxu_dtype)
    xg = jnp.dot(x_all, w_xh_ref[...].astype(mxu_dtype),
                 preferred_element_type=jnp.float32)
    xg = xg + b_ref[...]                 # bias broadcast hoisted: once, not per step
    xg_ref[...] = xg.reshape(T, Bp, 4 * Hp)

    # ---- 2) Sequential recurrence; one matmul per step, h/c as loop carry. ----
    # Load + cast W_hh ONCE; every unrolled step reuses the same SSA value so
    # the MXU weight push is not re-materialized from VMEM each iteration.
    w_hh = w_hh_ref[...].astype(mxu_dtype)

    def sigmoid(z):
        # one EUP push (tanh) instead of exp + reciprocal (2 pushes)
        return 0.5 * jnp.tanh(0.5 * z) + 0.5

    def step(t, carry):
        h, c = carry
        gates = xg_ref[t] + jnp.dot(h.astype(mxu_dtype), w_hh,
                                    preferred_element_type=jnp.float32)
        # gate slices are 128-aligned (Hp is a multiple of 128): no lane rotates
        i_g = sigmoid(gates[:, 0 * Hp:1 * Hp])
        f_g = sigmoid(gates[:, 1 * Hp:2 * Hp])
        g_g = jnp.tanh(gates[:, 2 * Hp:3 * Hp])
        o_g = sigmoid(gates[:, 3 * Hp:4 * Hp])
        c_new = f_g * c + i_g * g_g
        h_new = o_g * jnp.tanh(c_new)
        return h_new, c_new

    # unroll capped: full straight-line code only for small static T.
    h, c = lax.fori_loop(0, T, step, (h0_ref[...], c0_ref[...]), unroll=unroll)

    # ---- 3) Fused actor+critic head, single lane-dense output store. ----
    head = jnp.dot(h.astype(mxu_dtype), wh_ref[...].astype(mxu_dtype),
                   preferred_element_type=jnp.float32) + bh_ref[...]
    logits = head[:, 0:LANE]             # padded actor cols carry bias -1e30
    m = jnp.max(logits, axis=-1, keepdims=True)
    e = jnp.exp(logits - m)              # padded cols underflow to exactly 0
    s = jnp.sum(e, axis=-1, keepdims=True)
    if use_bf16:
        probs = e * pl.reciprocal(s, approx=True)   # EUP slot, off the VPU
    else:
        probs = e / s                                # exact for the f32 path
    # One full-width (Bp, 2*LANE) store -> unmasked vst vregs (v5e: 1 vst slot).
    head_ref[...] = jnp.concatenate([probs, head[:, LANE:2 * LANE]], axis=-1)
    # NOTE: rows B..Bp-1 of every output are softmax/LSTM of zero-padded batch
    # rows (nonzero because of gate biases); the wrapper slices them off.
    hn_ref[...] = h
    cn_ref[...] = c


@functools.partial(jax.jit, static_argnames=("fast",))
def actor_critic_rnn_forward(x, params, hidden=None, *, fast=True):
    """x: (B, T, I) float32 (batch_first, like the PyTorch module).

    hidden: optional (h0, c0), each (1, B, H); None -> zeros (PyTorch default).
    Returns (action_probs (B,2), state_value (B,1), (h_n, c_n) each (1,B,H)).
    fast=True uses bf16 MXU operands (f32 accumulation / elementwise).
    """
    B, T, I = x.shape
    H = params["w_hh"].shape[1]
    Bp = _round_up(B, SUBLANE)
    Hp = _round_up(H, LANE)
    Ip = _round_up(I, LANE)

    # Time-major + zero-padded x.
    # TODO(synk): at I=2 the input projection could be 2 VPU broadcast FMAs with
    # an unpadded x (drops the Ip=128 pad + the (Ip,4Hp) weight buffer); kept as
    # one MXU matmul here -- negligible at T=8, revisit for long sequences.
    x_p = jnp.zeros((T, Bp, Ip), jnp.float32)
    x_p = x_p.at[:, :B, :I].set(jnp.transpose(x, (1, 0, 2)).astype(jnp.float32))

    # Pack LSTM weights transposed, each gate block padded to Hp lanes
    # (gate order i, f, g, o, matching torch.nn.LSTM).
    w_ih = params["w_ih"]                     # (4H, I)
    w_hh = params["w_hh"]                     # (4H, H)
    b_all = params["b_ih"] + params["b_hh"]   # (4H,)
    w_xh_p = jnp.zeros((Ip, 4 * Hp), jnp.float32)
    w_hh_p = jnp.zeros((Hp, 4 * Hp), jnp.float32)
    b_p = jnp.zeros((1, 4 * Hp), jnp.float32)
    for g in range(4):
        w_xh_p = w_xh_p.at[:I, g * Hp:g * Hp + H].set(w_ih[g * H:(g + 1) * H, :].T)
        w_hh_p = w_hh_p.at[:H, g * Hp:g * Hp + H].set(w_hh[g * H:(g + 1) * H, :].T)
        b_p = b_p.at[0, g * Hp:g * Hp + H].set(b_all[g * H:(g + 1) * H])

    # Fused actor+critic head: cols [0,1] actor, col 128 critic; padded actor
    # logit columns get bias -1e30 so the in-kernel 128-wide softmax is exact.
    w_head = jnp.zeros((Hp, NH), jnp.float32)
    w_head = w_head.at[:H, 0:2].set(params["w_actor"].T)
    w_head = w_head.at[:H, LANE:LANE + 1].set(params["w_critic"].T)
    b_head = jnp.zeros((1, NH), jnp.float32)
    b_head = b_head.at[0, 0:2].set(params["b_actor"])
    b_head = b_head.at[0, 2:LANE].set(-1e30)
    b_head = b_head.at[0, LANE].set(params["b_critic"][0])

    # Initial hidden state (PyTorch hidden=None path -> zeros), zero-padded.
    if hidden is None:
        h0 = jnp.zeros((B, H), jnp.float32)
        c0 = jnp.zeros((B, H), jnp.float32)
    else:
        h0 = hidden[0][0].astype(jnp.float32)
        c0 = hidden[1][0].astype(jnp.float32)
    h0_p = jnp.zeros((Bp, Hp), jnp.float32).at[:B, :H].set(h0)
    c0_p = jnp.zeros((Bp, Hp), jnp.float32).at[:B, :H].set(c0)

    # VMEM budget from the actual footprint (+2x, +4 MiB headroom), capped well
    # below v7x's 64 MiB physical per-TC VMEM.
    f32b = 4
    footprint = f32b * (x_p.size + w_xh_p.size + w_hh_p.size + b_p.size
                        + w_head.size + b_head.size + h0_p.size + c0_p.size
                        + Bp * NH + 2 * Bp * Hp            # outputs
                        + T * Bp * 4 * Hp)                 # xg scratch
    vmem_limit = int(min(32 * 1024 * 1024, 2 * footprint + (4 << 20)))

    vmem = pl.BlockSpec(memory_space=pltpu.MemorySpace.VMEM)
    kernel = functools.partial(_lstm_ac_kernel, use_bf16=fast, unroll=min(T, 8))
    head_out, h_n, c_n = pl.pallas_call(
        kernel,
        out_shape=(
            jax.ShapeDtypeStruct((Bp, NH), jnp.float32),
            jax.ShapeDtypeStruct((Bp, Hp), jnp.float32),
            jax.ShapeDtypeStruct((Bp, Hp), jnp.float32),
        ),
        in_specs=[vmem] * 8,
        out_specs=(vmem, vmem, vmem),
        scratch_shapes=[pltpu.VMEM((T, Bp, 4 * Hp), jnp.float32)],
        compiler_params=pltpu.CompilerParams(vmem_limit_bytes=vmem_limit),
    )(x_p, w_xh_p, w_hh_p, b_p, w_head, b_head, h0_p, c0_p)

    probs = head_out[:B, 0:2]
    value = head_out[:B, LANE:LANE + 1]
    hidden_out = (h_n[:B, :H][None, :, :], c_n[:B, :H][None, :, :])
    return probs, value, hidden_out


def make_params(key, input_size, hidden_size):
    """Deterministic param init matching PyTorch shapes (uniform +-1/sqrt(H))."""
    ks = jax.random.split(key, 8)
    s = 1.0 / np.sqrt(hidden_size)
    u = lambda k, shape: jax.random.uniform(k, shape, jnp.float32, -s, s)
    return {
        "w_ih": u(ks[0], (4 * hidden_size, input_size)),
        "w_hh": u(ks[1], (4 * hidden_size, hidden_size)),
        "b_ih": u(ks[2], (4 * hidden_size,)),
        "b_hh": u(ks[3], (4 * hidden_size,)),
        "w_actor": u(ks[4], (2, hidden_size)),
        "b_actor": u(ks[5], (2,)),
        "w_critic": u(ks[6], (1, hidden_size)),
        "b_critic": u(ks[7], (1,)),
    }


def reference_forward(x, params, hidden=None):
    """Pure-JAX reference mirroring torch.nn.LSTM semantics (gate order i,f,g,o).

    Matmuls use Precision.HIGHEST so the f32 comparison is apples-to-apples.
    """
    B, T, _ = x.shape
    H = params["w_hh"].shape[1]
    if hidden is None:
        h = jnp.zeros((B, H), jnp.float32)
        c = jnp.zeros((B, H), jnp.float32)
    else:
        h = hidden[0][0].astype(jnp.float32)
        c = hidden[1][0].astype(jnp.float32)
    b = params["b_ih"] + params["b_hh"]
    hi = lax.Precision.HIGHEST
    for t in range(T):
        gates = (jnp.dot(x[:, t, :], params["w_ih"].T, precision=hi)
                 + jnp.dot(h, params["w_hh"].T, precision=hi) + b)
        i = jax.nn.sigmoid(gates[:, 0 * H:1 * H])
        f = jax.nn.sigmoid(gates[:, 1 * H:2 * H])
        g = jnp.tanh(gates[:, 2 * H:3 * H])
        o = jax.nn.sigmoid(gates[:, 3 * H:4 * H])
        c = f * c + i * g
        h = o * jnp.tanh(c)
    logits = jnp.dot(h, params["w_actor"].T, precision=hi) + params["b_actor"]
    probs = jax.nn.softmax(logits, axis=-1)
    value = jnp.dot(h, params["w_critic"].T, precision=hi) + params["b_critic"]
    return probs, value, (h[None], c[None])


def _check(got, ref, rtol, atol):
    for g, r in zip(got, ref):
        np.testing.assert_allclose(np.asarray(g), np.asarray(r), rtol=rtol, atol=atol)


if __name__ == "__main__":
    # Module defaults: input_size=2, hidden_size=128; small batch/sequence.
    B, T, I, H = 2, 8, 2, 128
    key = jax.random.PRNGKey(0)
    kx, kp, kh, kc = jax.random.split(key, 4)
    x = jax.random.normal(kx, (B, T, I), jnp.float32)
    params = make_params(kp, I, H)

    # ---- precise path (f32 MXU), hidden=None: tight check vs f32 reference ----
    p0, v0, (hn0, cn0) = actor_critic_rnn_forward(x, params, fast=False)
    jax.block_until_ready((p0, v0, hn0, cn0))
    rp, rv, (rh, rc) = reference_forward(x, params)
    _check((p0, v0, hn0, cn0), (rp, rv, rh, rc), rtol=1e-3, atol=1e-5)

    # ---- fast path (bf16 MXU operands, f32 accumulate): looser tolerance ----
    # bf16 rounding compounds across the T-step recurrence.
    p1, v1, (hn1, cn1) = actor_critic_rnn_forward(x, params, fast=True)
    jax.block_until_ready((p1, v1, hn1, cn1))
    _check((p1, v1, hn1, cn1), (rp, rv, rh, rc), rtol=5e-2, atol=2.5e-2)

    # ---- caller-provided (h0, c0): exercises the non-None hidden path ----
    hid = (0.1 * jax.random.normal(kh, (1, B, H), jnp.float32),
           0.1 * jax.random.normal(kc, (1, B, H), jnp.float32))
    p2, v2, (hn2, cn2) = actor_critic_rnn_forward(x, params, hid, fast=False)
    jax.block_until_ready((p2, v2, hn2, cn2))
    rp2, rv2, (rh2, rc2) = reference_forward(x, params, hid)
    _check((p2, v2, hn2, cn2), (rp2, rv2, rh2, rc2), rtol=1e-3, atol=1e-5)

    print("KERNEL_OK")
</pallas_src>

<mosaic_0001>
module attributes {stable_mosaic.version = 11 : i64} {
  func.func @_lstm_ac_kernel(%arg0: memref<8x8x128xf32, #tpu.memory_space<vmem>>, %arg1: memref<128x512xf32, #tpu.memory_space<vmem>>, %arg2: memref<128x512xf32, #tpu.memory_space<vmem>>, %arg3: memref<1x512xf32, #tpu.memory_space<vmem>>, %arg4: memref<128x256xf32, #tpu.memory_space<vmem>>, %arg5: memref<1x256xf32, #tpu.memory_space<vmem>>, %arg6: memref<8x128xf32, #tpu.memory_space<vmem>>, %arg7: memref<8x128xf32, #tpu.memory_space<vmem>>, %arg8: memref<8x256xf32, #tpu.memory_space<vmem>>, %arg9: memref<8x128xf32, #tpu.memory_space<vmem>>, %arg10: memref<8x128xf32, #tpu.memory_space<vmem>>, %arg11: memref<8x8x512xf32, #tpu.memory_space<vmem>>) attributes {dimension_semantics = [], scalar_prefetch = 0 : i64, scratch_operands = 1 : i64, tpu.core_type = #tpu.core_type<tc>} {
    %c0 = arith.constant 0 : index
    %c0_0 = arith.constant 0 : index
    %c0_1 = arith.constant 0 : index
    %0 = vector.load %arg0[%c0, %c0_0, %c0_1] : memref<8x8x128xf32, #tpu.memory_space<vmem>>, vector<8x8x128xf32>
    %1 = vector.shape_cast %0 : vector<8x8x128xf32> to vector<64x128xf32>
    %c0_2 = arith.constant 0 : index
    %c0_3 = arith.constant 0 : index
    %2 = vector.load %arg1[%c0_2, %c0_3] : memref<128x512xf32, #tpu.memory_space<vmem>>, vector<128x512xf32>
    %cst = arith.constant dense<0.000000e+00> : vector<64x512xf32>
    %3 = tpu.matmul %1, %2, %cst {dimension_numbers = #tpu.dot_dimension_numbers<[1], [0], [0], [1], [0, 0, 1, 1], [], []>} : vector<64x128xf32>, vector<128x512xf32>, vector<64x512xf32> -> vector<64x512xf32>
    %c0_4 = arith.constant 0 : index
    %c0_5 = arith.constant 0 : index
    %4 = vector.load %arg3[%c0_4, %c0_5] : memref<1x512xf32, #tpu.memory_space<vmem>>, vector<1x512xf32>
    %5 = vector.broadcast %4 : vector<1x512xf32> to vector<64x512xf32>
    %6 = arith.addf %3, %5 : vector<64x512xf32>
    %7 = vector.shape_cast %6 : vector<64x512xf32> to vector<8x8x512xf32>
    %c0_6 = arith.constant 0 : index
    %c0_7 = arith.constant 0 : index
    %c0_8 = arith.constant 0 : index
    %8 = vector.load %arg11[%c0_6, %c0_7, %c0_8] : memref<8x8x512xf32, #tpu.memory_space<vmem>>, vector<8x8x512xf32>
    tpu.vector_store %arg11[%c0_6, %c0_7, %c0_8], %7 {strides = array<i32>} : memref<8x8x512xf32, #tpu.memory_space<vmem>>, vector<8x8x512xf32>,
    %c0_9 = arith.constant 0 : index
    %c0_10 = arith.constant 0 : index
    %9 = vector.load %arg2[%c0_9, %c0_10] : memref<128x512xf32, #tpu.memory_space<vmem>>, vector<128x512xf32>
    %c0_11 = arith.constant 0 : index
    %c0_12 = arith.constant 0 : index
    %10 = vector.load %arg6[%c0_11, %c0_12] : memref<8x128xf32, #tpu.memory_space<vmem>>, vector<8x128xf32>
    %c0_13 = arith.constant 0 : index
    %c0_14 = arith.constant 0 : index
    %11 = vector.load %arg7[%c0_13, %c0_14] : memref<8x128xf32, #tpu.memory_space<vmem>>, vector<8x128xf32>
    %c0_i32 = arith.constant 0 : i32
    %12 = arith.index_cast %c0_i32 : i32 to index
    %c0_15 = arith.constant 0 : index
    %c0_16 = arith.constant 0 : index
    %13 = vector.load %arg11[%12, %c0_15, %c0_16] : memref<8x8x512xf32, #tpu.memory_space<vmem>>, vector<1x8x512xf32>
    %14 = vector.shape_cast %13 : vector<1x8x512xf32> to vector<8x512xf32>
    %cst_17 = arith.constant dense<0.000000e+00> : vector<8x512xf32>
    %15 = tpu.matmul %10, %9, %cst_17 {dimension_numbers = #tpu.dot_dimension_numbers<[1], [0], [0], [1], [0, 0, 1, 1], [], []>} : vector<8x128xf32>, vector<128x512xf32>, vector<8x512xf32> -> vector<8x512xf32>
    %16 = arith.addf %14, %15 : vector<8x512xf32>
    %17 = vector.extract_strided_slice %16 {offsets = [0, 0], sizes = [8, 128], strides = [1, 1]} : vector<8x512xf32> to vector<8x128xf32>
    %cst_18 = arith.constant 5.000000e-01 : f32
    %18 = vector.broadcast %cst_18 : f32 to vector<8x128xf32>
    %19 = arith.mulf %18, %17 : vector<8x128xf32>
    %20 = math.tanh %19 : vector<8x128xf32>
    %cst_19 = arith.constant 5.000000e-01 : f32
    %21 = vector.broadcast %cst_19 : f32 to vector<8x128xf32>
    %22 = arith.mulf %21, %20 : vector<8x128xf32>
    %cst_20 = arith.constant 5.000000e-01 : f32
    %23 = vector.broadcast %cst_20 : f32 to vector<8x128xf32>
    %24 = arith.addf %22, %23 : vector<8x128xf32>
    %25 = vector.extract_strided_slice %16 {offsets = [0, 128], sizes = [8, 128], strides = [1, 1]} : vector<8x512xf32> to vector<8x128xf32>
    %cst_21 = arith.constant 5.000000e-01 : f32
    %26 = vector.broadcast %cst_21 : f32 to vector<8x128xf32>
    %27 = arith.mulf %26, %25 : vector<8x128xf32>
    %28 = math.tanh %27 : vector<8x128xf32>
    %cst_22 = arith.constant 5.000000e-01 : f32
    %29 = vector.broadcast %cst_22 : f32 to vector<8x128xf32>
    %30 = arith.mulf %29, %28 : vector<8x128xf32>
    %cst_23 = arith.constant 5.000000e-01 : f32
    %31 = vector.broadcast %cst_23 : f32 to vector<8x128xf32>
    %32 = arith.addf %30, %31 : vector<8x128xf32>
    %33 = vector.extract_strided_slice %16 {offsets = [0, 256], sizes = [8, 128], strides = [1, 1]} : vector<8x512xf32> to vector<8x128xf32>
    %34 = math.tanh %33 : vector<8x128xf32>
    %35 = vector.extract_strided_slice %16 {offsets = [0, 384], sizes = [8, 128], strides = [1, 1]} : vector<8x512xf32> to vector<8x128xf32>
    %cst_24 = arith.constant 5.000000e-01 : f32
    %36 = vector.broadcast %cst_24 : f32 to vector<8x128xf32>
    %37 = arith.mulf %36, %35 : vector<8x128xf32>
    %38 = math.tanh %37 : vector<8x128xf32>
    %cst_25 = arith.constant 5.000000e-01 : f32
    %39 = vector.broadcast %cst_25 : f32 to vector<8x128xf32>
    %40 = arith.mulf %39, %38 : vector<8x128xf32>
    %cst_26 = arith.constant 5.000000e-01 : f32
    %41 = vector.broadcast %cst_26 : f32 to vector<8x128xf32>
    %42 = arith.addf %40, %41 : vector<8x128xf32>
    %43 = arith.mulf %32, %11 : vector<8x128xf32>
    %44 = arith.mulf %24, %34 : vector<8x128xf32>
    %45 = arith.addf %43, %44 : vector<8x128xf32>
    %46 = math.tanh %45 : vector<8x128xf32>
    %47 = arith.mulf %42, %46 : vector<8x128xf32>
    %c1_i32 = arith.constant 1 : i32
    %48 = arith.index_cast %c1_i32 : i32 to index
    %c0_27 = arith.constant 0 : index
    %c0_28 = arith.constant 0 : index
    %49 = vector.load %arg11[%48, %c0_27, %c0_28] : memref<8x8x512xf32, #tpu.memory_space<vmem>>, vector<1x8x512xf32>
    %50 = vector.shape_cast %49 : vector<1x8x512xf32> to vector<8x512xf32>
    %cst_29 = arith.constant dense<0.000000e+00> : vector<8x512xf32>
    %51 = tpu.matmul %47, %9, %cst_29 {dimension_numbers = #tpu.dot_dimension_numbers<[1], [0], [0], [1], [0, 0, 1, 1], [], []>} : vector<8x128xf32>, vector<128x512xf32>, vector<8x512xf32> -> vector<8x512xf32>
    %52 = arith.addf %50, %51 : vector<8x512xf32>
    %53 = vector.extract_strided_slice %52 {offsets = [0, 0], sizes = [8, 128], strides = [1, 1]} : vector<8x512xf32> to vector<8x128xf32>
    %cst_30 = arith.constant 5.000000e-01 : f32
    %54 = vector.broadcast %cst_30 : f32 to vector<8x128xf32>
    %55 = arith.mulf %54, %53 : vector<8x128xf32>
    %56 = math.tanh %55 : vector<8x128xf32>
    %cst_31 = arith.constant 5.000000e-01 : f32
    %57 = vector.broadcast %cst_31 : f32 to vector<8x128xf32>
    %58 = arith.mulf %57, %56 : vector<8x128xf32>
    %cst_32 = arith.constant 5.000000e-01 : f32
    %59 = vector.broadcast %cst_32 : f32 to vector<8x128xf32>
    %60 = arith.addf %58, %59 : vector<8x128xf32>
    %61 = vector.extract_strided_slice %52 {offsets = [0, 128], sizes = [8, 128], strides = [1, 1]} : vector<8x512xf32> to vector<8x128xf32>
    %cst_33 = arith.constant 5.000000e-01 : f32
    %62 = vector.broadcast %cst_33 : f32 to vector<8x128xf32>
    %63 = arith.mulf %62, %61 : vector<8x128xf32>
    %64 = math.tanh %63 : vector<8x128xf32>
    %cst_34 = arith.constant 5.000000e-01 : f32
    %65 = vector.broadcast %cst_34 : f32 to vector<8x128xf32>
    %66 = arith.mulf %65, %64 : vector<8x128xf32>
    %cst_35 = arith.constant 5.000000e-01 : f32
    %67 = vector.broadcast %cst_35 : f32 to vector<8x128xf32>
    %68 = arith.addf %66, %67 : vector<8x128xf32>
    %69 = vector.extract_strided_slice %52 {offsets = [0, 256], sizes = [8, 128], strides = [1, 1]} : vector<8x512xf32> to vector<8x128xf32>
    %70 = math.tanh %69 : vector<8x128xf32>
    %71 = vector.extract_strided_slice %52 {offsets = [0, 384], sizes = [8, 128], strides = [1, 1]} : vector<8x512xf32> to vector<8x128xf32>
    %cst_36 = arith.constant 5.000000e-01 : f32
    %72 = vector.broadcast %cst_36 : f32 to vector<8x128xf32>
    %73 = arith.mulf %72, %71 : vector<8x128xf32>
    %74 = math.tanh %73 : vector<8x128xf32>
    %cst_37 = arith.constant 5.000000e-01 : f32
    %75 = vector.broadcast %cst_37 : f32 to vector<8x128xf32>
    %76 = arith.mulf %75, %74 : vector<8x128xf32>
    %cst_38 = arith.constant 5.000000e-01 : f32
    %77 = vector.broadcast %cst_38 : f32 to vector<8x128xf32>
    %78 = arith.addf %76, %77 : vector<8x128xf32>
    %79 = arith.mulf %68, %45 : vector<8x128xf32>
    %80 = arith.mulf %60, %70 : vector<8x128xf32>
    %81 = arith.addf %79, %80 : vector<8x128xf32>
    %82 = math.tanh %81 : vector<8x128xf32>
    %83 = arith.mulf %78, %82 : vector<8x128xf32>
    %c2_i32 = arith.constant 2 : i32
    %84 = arith.index_cast %c2_i32 : i32 to index
    %c0_39 = arith.constant 0 : index
    %c0_40 = arith.constant 0 : index
    %85 = vector.load %arg11[%84, %c0_39, %c0_40] : memref<8x8x512xf32, #tpu.memory_space<vmem>>, vector<1x8x512xf32>
    %86 = vector.shape_cast %85 : vector<1x8x512xf32> to vector<8x512xf32>
    %cst_41 = arith.constant dense<0.000000e+00> : vector<8x512xf32>
    %87 = tpu.matmul %83, %9, %cst_41 {dimension_numbers = #tpu.dot_dimension_numbers<[1], [0], [0], [1], [0, 0, 1, 1], [], []>} : vector<8x128xf32>, vector<128x512xf32>, vector<8x512xf32> -> vector<8x512xf32>
    %88 = arith.addf %86, %87 : vector<8x512xf32>
    %89 = vector.extract_strided_slice %88 {offsets = [0, 0], sizes = [8, 128], strides = [1, 1]} : vector<8x512xf32> to vector<8x128xf32>
    %cst_42 = arith.constant 5.000000e-01 : f32
    %90 = vector.broadcast %cst_42 : f32 to vector<8x128xf32>
    %91 = arith.mulf %90, %89 : vector<8x128xf32>
    %92 = math.tanh %91 : vector<8x128xf32>
    %cst_43 = arith.constant 5.000000e-01 : f32
    %93 = vector.broadcast %cst_43 : f32 to vector<8x128xf32>
    %94 = arith.mulf %93, %92 : vector<8x128xf32>
    %cst_44 = arith.constant 5.000000e-01 : f32
    %95 = vector.broadcast %cst_44 : f32 to vector<8x128xf32>
    %96 = arith.addf %94, %95 : vector<8x128xf32>
    %97 = vector.extract_strided_slice %88 {offsets = [0, 128], sizes = [8, 128], strides = [1, 1]} : vector<8x512xf32> to vector<8x128xf32>
    %cst_45 = arith.constant 5.000000e-01 : f32
    %98 = vector.broadcast %cst_45 : f32 to vector<8x128xf32>
    %99 = arith.mulf %98, %97 : vector<8x128xf32>
    %100 = math.tanh %99 : vector<8x128xf32>
    %cst_46 = arith.constant 5.000000e-01 : f32
    %101 = vector.broadcast %cst_46 : f32 to vector<8x128xf32>
    %102 = arith.mulf %101, %100 : vector<8x128xf32>
    %cst_47 = arith.constant 5.000000e-01 : f32
    %103 = vector.broadcast %cst_47 : f32 to vector<8x128xf32>
    %104 = arith.addf %102, %103 : vector<8x128xf32>
    %105 = vector.extract_strided_slice %88 {offsets = [0, 256], sizes = [8, 128], strides = [1, 1]} : vector<8x512xf32> to vector<8x128xf32>
    %106 = math.tanh %105 : vector<8x128xf32>
    %107 = vector.extract_strided_slice %88 {offsets = [0, 384], sizes = [8, 128], strides = [1, 1]} : vector<8x512xf32> to vector<8x128xf32>
    %cst_48 = arith.constant 5.000000e-01 : f32
    %108 = vector.broadcast %cst_48 : f32 to vector<8x128xf32>
    %109 = arith.mulf %108, %107 : vector<8x128xf32>
    %110 = math.tanh %109 : vector<8x128xf32>
    %cst_49 = arith.constant 5.000000e-01 : f32
    %111 = vector.broadcast %cst_49 : f32 to vector<8x128xf32>
    %112 = arith.mulf %111, %110 : vector<8x128xf32>
    %cst_50 = arith.constant 5.000000e-01 : f32
    %113 = vector.broadcast %cst_50 : f32 to vector<8x128xf32>
    %114 = arith.addf %112, %113 : vector<8x128xf32>
    %115 = arith.mulf %104, %81 : vector<8x128xf32>
    %116 = arith.mulf %96, %106 : vector<8x128xf32>
    %117 = arith.addf %115, %116 : vector<8x128xf32>
    %118 = math.tanh %117 : vector<8x128xf32>
    %119 = arith.mulf %114, %118 : vector<8x128xf32>
    %c3_i32 = arith.constant 3 : i32
    %120 = arith.index_cast %c3_i32 : i32 to index
    %c0_51 = arith.constant 0 : index
    %c0_52 = arith.constant 0 : index
    %121 = vector.load %arg11[%120, %c0_51, %c0_52] : memref<8x8x512xf32, #tpu.memory_space<vmem>>, vector<1x8x512xf32>
    %122 = vector.shape_cast %121 : vector<1x8x512xf32> to vector<8x512xf32>
    %cst_53 = arith.constant dense<0.000000e+00> : vector<8x512xf32>
    %123 = tpu.matmul %119, %9, %cst_53 {dimension_numbers = #tpu.dot_dimension_numbers<[1], [0], [0], [1], [0, 0, 1, 1], [], []>} : vector<8x128xf32>, vector<128x512xf32>, vector<8x512xf32> -> vector<8x512xf32>
    %124 = arith.addf %122, %123 : vector<8x512xf32>
    %125 = vector.extract_strided_slice %124 {offsets = [0, 0], sizes = [8, 128], strides = [1, 1]} : vector<8x512xf32> to vector<8x128xf32>
    %cst_54 = arith.constant 5.000000e-01 : f32
    %126 = vector.broadcast %cst_54 : f32 to vector<8x128xf32>
    %127 = arith.mulf %126, %125 : vector<8x128xf32>
    %128 = math.tanh %127 : vector<8x128xf32>
    %cst_55 = arith.constant 5.000000e-01 : f32
    %129 = vector.broadcast %cst_55 : f32 to vector<8x128xf32>
    %130 = arith.mulf %129, %128 : vector<8x128xf32>
    %cst_56 = arith.constant 5.000000e-01 : f32
    %131 = vector.broadcast %cst_56 : f32 to vector<8x128xf32>
    %132 = arith.addf %130, %131 : vector<8x128xf32>
    %133 = vector.extract_strided_slice %124 {offsets = [0, 128], sizes = [8, 128], strides = [1, 1]} : vector<8x512xf32> to vector<8x128xf32>
    %cst_57 = arith.constant 5.000000e-01 : f32
    %134 = vector.broadcast %cst_57 : f32 to vector<8x128xf32>
    %135 = arith.mulf %134, %133 : vector<8x128xf32>
    %136 = math.tanh %135 : vector<8x128xf32>
    %cst_58 = arith.constant 5.000000e-01 : f32
    %137 = vector.broadcast %cst_58 : f32 to vector<8x128xf32>
    %138 = arith.mulf %137, %136 : vector<8x128xf32>
    %cst_59 = arith.constant 5.000000e-01 : f32
    %139 = vector.broadcast %cst_59 : f32 to vector<8x128xf32>
    %140 = arith.addf %138, %139 : vector<8x128xf32>
    %141 = vector.extract_strided_slice %124 {offsets = [0, 256], sizes = [8, 128], strides = [1, 1]} : vector<8x512xf32> to vector<8x128xf32>
    %142 = math.tanh %141 : vector<8x128xf32>
    %143 = vector.extract_strided_slice %124 {offsets = [0, 384], sizes = [8, 128], strides = [1, 1]} : vector<8x512xf32> to vector<8x128xf32>
    %cst_60 = arith.constant 5.000000e-01 : f32
    %144 = vector.broadcast %cst_60 : f32 to vector<8x128xf32>
    %145 = arith.mulf %144, %143 : vector<8x128xf32>
    %146 = math.tanh %145 : vector<8x128xf32>
    %cst_61 = arith.constant 5.000000e-01 : f32
    %147 = vector.broadcast %cst_61 : f32 to vector<8x128xf32>
    %148 = arith.mulf %147, %146 : vector<8x128xf32>
    %cst_62 = arith.constant 5.000000e-01 : f32
    %149 = vector.broadcast %cst_62 : f32 to vector<8x128xf32>
    %150 = arith.addf %148, %149 : vector<8x128xf32>
    %151 = arith.mulf %140, %117 : vector<8x128xf32>
    %152 = arith.mulf %132, %142 : vector<8x128xf32>
    %153 = arith.addf %151, %152 : vector<8x128xf32>
    %154 = math.tanh %153 : vector<8x128xf32>
    %155 = arith.mulf %150, %154 : vector<8x128xf32>
    %c4_i32 = arith.constant 4 : i32
    %156 = arith.index_cast %c4_i32 : i32 to index
    %c0_63 = arith.constant 0 : index
    %c0_64 = arith.constant 0 : index
    %157 = vector.load %arg11[%156, %c0_63, %c0_64] : memref<8x8x512xf32, #tpu.memory_space<vmem>>, vector<1x8x512xf32>
    %158 = vector.shape_cast %157 : vector<1x8x512xf32> to vector<8x512xf32>
    %cst_65 = arith.constant dense<0.000000e+00> : vector<8x512xf32>
    %159 = tpu.matmul %155, %9, %cst_65 {dimension_numbers = #tpu.dot_dimension_numbers<[1], [0], [0], [1], [0, 0, 1, 1], [], []>} : vector<8x128xf32>, vector<128x512xf32>, vector<8x512xf32> -> vector<8x512xf32>
    %160 = arith.addf %158, %159 : vector<8x512xf32>
    %161 = vector.extract_strided_slice %160 {offsets = [0, 0], sizes = [8, 128], strides = [1, 1]} : vector<8x512xf32> to vector<8x128xf32>
    %cst_66 = arith.constant 5.000000e-01 : f32
    %162 = vector.broadcast %cst_66 : f32 to vector<8x128xf32>
    %163 = arith.mulf %162, %161 : vector<8x128xf32>
    %164 = math.tanh %163 : vector<8x128xf32>
    %cst_67 = arith.constant 5.000000e-01 : f32
    %165 = vector.broadcast %cst_67 : f32 to vector<8x128xf32>
    %166 = arith.mulf %165, %164 : vector<8x128xf32>
    %cst_68 = arith.constant 5.000000e-01 : f32
    %167 = vector.broadcast %cst_68 : f32 to vector<8x128xf32>
    %168 = arith.addf %166, %167 : vector<8x128xf32>
    %169 = vector.extract_strided_slice %160 {offsets = [0, 128], sizes = [8, 128], strides = [1, 1]} : vector<8x512xf32> to vector<8x128xf32>
    %cst_69 = arith.constant 5.000000e-01 : f32
    %170 = vector.broadcast %cst_69 : f32 to vector<8x128xf32>
    %171 = arith.mulf %170, %169 : vector<8x128xf32>
    %172 = math.tanh %171 : vector<8x128xf32>
    %cst_70 = arith.constant 5.000000e-01 : f32
    %173 = vector.broadcast %cst_70 : f32 to vector<8x128xf32>
    %174 = arith.mulf %173, %172 : vector<8x128xf32>
    %cst_71 = arith.constant 5.000000e-01 : f32
    %175 = vector.broadcast %cst_71 : f32 to vector<8x128xf32>
    %176 = arith.addf %174, %175 : vector<8x128xf32>
    %177 = vector.extract_strided_slice %160 {offsets = [0, 256], sizes = [8, 128], strides = [1, 1]} : vector<8x512xf32> to vector<8x128xf32>
    %178 = math.tanh %177 : vector<8x128xf32>
    %179 = vector.extract_strided_slice %160 {offsets = [0, 384], sizes = [8, 128], strides = [1, 1]} : vector<8x512xf32> to vector<8x128xf32>
    %cst_72 = arith.constant 5.000000e-01 : f32
    %180 = vector.broadcast %cst_72 : f32 to vector<8x128xf32>
    %181 = arith.mulf %180, %179 : vector<8x128xf32>
    %182 = math.tanh %181 : vector<8x128xf32>
    %cst_73 = arith.constant 5.000000e-01 : f32
    %183 = vector.broadcast %cst_73 : f32 to vector<8x128xf32>
    %184 = arith.mulf %183, %182 : vector<8x128xf32>
    %cst_74 = arith.constant 5.000000e-01 : f32
    %185 = vector.broadcast %cst_74 : f32 to vector<8x128xf32>
    %186 = arith.addf %184, %185 : vector<8x128xf32>
    %187 = arith.mulf %176, %153 : vector<8x128xf32>
    %188 = arith.mulf %168, %178 : vector<8x128xf32>
    %189 = arith.addf %187, %188 : vector<8x128xf32>
    %190 = math.tanh %189 : vector<8x128xf32>
    %191 = arith.mulf %186, %190 : vector<8x128xf32>
    %c5_i32 = arith.constant 5 : i32
    %192 = arith.index_cast %c5_i32 : i32 to index
    %c0_75 = arith.constant 0 : index
    %c0_76 = arith.constant 0 : index
    %193 = vector.load %arg11[%192, %c0_75, %c0_76] : memref<8x8x512xf32, #tpu.memory_space<vmem>>, vector<1x8x512xf32>
    %194 = vector.shape_cast %193 : vector<1x8x512xf32> to vector<8x512xf32>
    %cst_77 = arith.constant dense<0.000000e+00> : vector<8x512xf32>
    %195 = tpu.matmul %191, %9, %cst_77 {dimension_numbers = #tpu.dot_dimension_numbers<[1], [0], [0], [1], [0, 0, 1, 1], [], []>} : vector<8x128xf32>, vector<128x512xf32>, vector<8x512xf32> -> vector<8x512xf32>
    %196 = arith.addf %194, %195 : vector<8x512xf32>
    %197 = vector.extract_strided_slice %196 {offsets = [0, 0], sizes = [8, 128], strides = [1, 1]} : vector<8x512xf32> to vector<8x128xf32>
    %cst_78 = arith.constant 5.000000e-01 : f32
    %198 = vector.broadcast %cst_78 : f32 to vector<8x128xf32>
    %199 = arith.mulf %198, %197 : vector<8x128xf32>
    %200 = math.tanh %199 : vector<8x128xf32>
    %cst_79 = arith.constant 5.000000e-01 : f32
    %201 = vector.broadcast %cst_79 : f32 to vector<8x128xf32>
    %202 = arith.mulf %201, %200 : vector<8x128xf32>
    %cst_80 = arith.constant 5.000000e-01 : f32
    %203 = vector.broadcast %cst_80 : f32 to vector<8x128xf32>
    %204 = arith.addf %202, %203 : vector<8x128xf32>
    %205 = vector.extract_strided_slice %196 {offsets = [0, 128], sizes = [8, 128], strides = [1, 1]} : vector<8x512xf32> to vector<8x128xf32>
    %cst_81 = arith.constant 5.000000e-01 : f32
    %206 = vector.broadcast %cst_81 : f32 to vector<8x128xf32>
    %207 = arith.mulf %206, %205 : vector<8x128xf32>
    %208 = math.tanh %207 : vector<8x128xf32>
    %cst_82 = arith.constant 5.000000e-01 : f32
    %209 = vector.broadcast %cst_82 : f32 to vector<8x128xf32>
    %210 = arith.mulf %209, %208 : vector<8x128xf32>
    %cst_83 = arith.constant 5.000000e-01 : f32
    %211 = vector.broadcast %cst_83 : f32 to vector<8x128xf32>
    %212 = arith.addf %210, %211 : vector<8x128xf32>
    %213 = vector.extract_strided_slice %196 {offsets = [0, 256], sizes = [8, 128], strides = [1, 1]} : vector<8x512xf32> to vector<8x128xf32>
    %214 = math.tanh %213 : vector<8x128xf32>
    %215 = vector.extract_strided_slice %196 {offsets = [0, 384], sizes = [8, 128], strides = [1, 1]} : vector<8x512xf32> to vector<8x128xf32>
    %cst_84 = arith.constant 5.000000e-01 : f32
    %216 = vector.broadcast %cst_84 : f32 to vector<8x128xf32>
    %217 = arith.mulf %216, %215 : vector<8x128xf32>
    %218 = math.tanh %217 : vector<8x128xf32>
    %cst_85 = arith.constant 5.000000e-01 : f32
    %219 = vector.broadcast %cst_85 : f32 to vector<8x128xf32>
    %220 = arith.mulf %219, %218 : vector<8x128xf32>
    %cst_86 = arith.constant 5.000000e-01 : f32
    %221 = vector.broadcast %cst_86 : f32 to vector<8x128xf32>
    %222 = arith.addf %220, %221 : vector<8x128xf32>
    %223 = arith.mulf %212, %189 : vector<8x128xf32>
    %224 = arith.mulf %204, %214 : vector<8x128xf32>
    %225 = arith.addf %223, %224 : vector<8x128xf32>
    %226 = math.tanh %225 : vector<8x128xf32>
    %227 = arith.mulf %222, %226 : vector<8x128xf32>
    %c6_i32 = arith.constant 6 : i32
    %228 = arith.index_cast %c6_i32 : i32 to index
    %c0_87 = arith.constant 0 : index
    %c0_88 = arith.constant 0 : index
    %229 = vector.load %arg11[%228, %c0_87, %c0_88] : memref<8x8x512xf32, #tpu.memory_space<vmem>>, vector<1x8x512xf32>
    %230 = vector.shape_cast %229 : vector<1x8x512xf32> to vector<8x512xf32>
    %cst_89 = arith.constant dense<0.000000e+00> : vector<8x512xf32>
    %231 = tpu.matmul %227, %9, %cst_89 {dimension_numbers = #tpu.dot_dimension_numbers<[1], [0], [0], [1], [0, 0, 1, 1], [], []>} : vector<8x128xf32>, vector<128x512xf32>, vector<8x512xf32> -> vector<8x512xf32>
    %232 = arith.addf %230, %231 : vector<8x512xf32>
    %233 = vector.extract_strided_slice %232 {offsets = [0, 0], sizes = [8, 128], strides = [1, 1]} : vector<8x512xf32> to vector<8x128xf32>
    %cst_90 = arith.constant 5.000000e-01 : f32
    %234 = vector.broadcast %cst_90 : f32 to vector<8x128xf32>
    %235 = arith.mulf %234, %233 : vector<8x128xf32>
    %236 = math.tanh %235 : vector<8x128xf32>
    %cst_91 = arith.constant 5.000000e-01 : f32
    %237 = vector.broadcast %cst_91 : f32 to vector<8x128xf32>
    %238 = arith.mulf %237, %236 : vector<8x128xf32>
    %cst_92 = arith.constant 5.000000e-01 : f32
    %239 = vector.broadcast %cst_92 : f32 to vector<8x128xf32>
    %240 = arith.addf %238, %239 : vector<8x128xf32>
    %241 = vector.extract_strided_slice %232 {offsets = [0, 128], sizes = [8, 128], strides = [1, 1]} : vector<8x512xf32> to vector<8x128xf32>
    %cst_93 = arith.constant 5.000000e-01 : f32
    %242 = vector.broadcast %cst_93 : f32 to vector<8x128xf32>
    %243 = arith.mulf %242, %241 : vector<8x128xf32>
    %244 = math.tanh %243 : vector<8x128xf32>
    %cst_94 = arith.constant 5.000000e-01 : f32
    %245 = vector.broadcast %cst_94 : f32 to vector<8x128xf32>
    %246 = arith.mulf %245, %244 : vector<8x128xf32>
    %cst_95 = arith.constant 5.000000e-01 : f32
    %247 = vector.broadcast %cst_95 : f32 to vector<8x128xf32>
    %248 = arith.addf %246, %247 : vector<8x128xf32>
    %249 = vector.extract_strided_slice %232 {offsets = [0, 256], sizes = [8, 128], strides = [1, 1]} : vector<8x512xf32> to vector<8x128xf32>
    %250 = math.tanh %249 : vector<8x128xf32>
    %251 = vector.extract_strided_slice %232 {offsets = [0, 384], sizes = [8, 128], strides = [1, 1]} : vector<8x512xf32> to vector<8x128xf32>
    %cst_96 = arith.constant 5.000000e-01 : f32
    %252 = vector.broadcast %cst_96 : f32 to vector<8x128xf32>
    %253 = arith.mulf %252, %251 : vector<8x128xf32>
    %254 = math.tanh %253 : vector<8x128xf32>
    %cst_97 = arith.constant 5.000000e-01 : f32
    %255 = vector.broadcast %cst_97 : f32 to vector<8x128xf32>
    %256 = arith.mulf %255, %254 : vector<8x128xf32>
    %cst_98 = arith.constant 5.000000e-01 : f32
    %257 = vector.broadcast %cst_98 : f32 to vector<8x128xf32>
    %258 = arith.addf %256, %257 : vector<8x128xf32>
    %259 = arith.mulf %248, %225 : vector<8x128xf32>
    %260 = arith.mulf %240, %250 : vector<8x128xf32>
    %261 = arith.addf %259, %260 : vector<8x128xf32>
    %262 = math.tanh %261 : vector<8x128xf32>
    %263 = arith.mulf %258, %262 : vector<8x128xf32>
    %c7_i32 = arith.constant 7 : i32
    %264 = arith.index_cast %c7_i32 : i32 to index
    %c0_99 = arith.constant 0 : index
    %c0_100 = arith.constant 0 : index
    %265 = vector.load %arg11[%264, %c0_99, %c0_100] : memref<8x8x512xf32, #tpu.memory_space<vmem>>, vector<1x8x512xf32>
    %266 = vector.shape_cast %265 : vector<1x8x512xf32> to vector<8x512xf32>
    %cst_101 = arith.constant dense<0.000000e+00> : vector<8x512xf32>
    %267 = tpu.matmul %263, %9, %cst_101 {dimension_numbers = #tpu.dot_dimension_numbers<[1], [0], [0], [1], [0, 0, 1, 1], [], []>} : vector<8x128xf32>, vector<128x512xf32>, vector<8x512xf32> -> vector<8x512xf32>
    %268 = arith.addf %266, %267 : vector<8x512xf32>
    %269 = vector.extract_strided_slice %268 {offsets = [0, 0], sizes = [8, 128], strides = [1, 1]} : vector<8x512xf32> to vector<8x128xf32>
    %cst_102 = arith.constant 5.000000e-01 : f32
    %270 = vector.broadcast %cst_102 : f32 to vector<8x128xf32>
    %271 = arith.mulf %270, %269 : vector<8x128xf32>
    %272 = math.tanh %271 : vector<8x128xf32>
    %cst_103 = arith.constant 5.000000e-01 : f32
    %273 = vector.broadcast %cst_103 : f32 to vector<8x128xf32>
    %274 = arith.mulf %273, %272 : vector<8x128xf32>
    %cst_104 = arith.constant 5.000000e-01 : f32
    %275 = vector.broadcast %cst_104 : f32 to vector<8x128xf32>
    %276 = arith.addf %274, %275 : vector<8x128xf32>
    %277 = vector.extract_strided_slice %268 {offsets = [0, 128], sizes = [8, 128], strides = [1, 1]} : vector<8x512xf32> to vector<8x128xf32>
    %cst_105 = arith.constant 5.000000e-01 : f32
    %278 = vector.broadcast %cst_105 : f32 to vector<8x128xf32>
    %279 = arith.mulf %278, %277 : vector<8x128xf32>
    %280 = math.tanh %279 : vector<8x128xf32>
    %cst_106 = arith.constant 5.000000e-01 : f32
    %281 = vector.broadcast %cst_106 : f32 to vector<8x128xf32>
    %282 = arith.mulf %281, %280 : vector<8x128xf32>
    %cst_107 = arith.constant 5.000000e-01 : f32
    %283 = vector.broadcast %cst_107 : f32 to vector<8x128xf32>
    %284 = arith.addf %282, %283 : vector<8x128xf32>
    %285 = vector.extract_strided_slice %268 {offsets = [0, 256], sizes = [8, 128], strides = [1, 1]} : vector<8x512xf32> to vector<8x128xf32>
    %286 = math.tanh %285 : vector<8x128xf32>
    %287 = vector.extract_strided_slice %268 {offsets = [0, 384], sizes = [8, 128], strides = [1, 1]} : vector<8x512xf32> to vector<8x128xf32>
    %cst_108 = arith.constant 5.000000e-01 : f32
    %288 = vector.broadcast %cst_108 : f32 to vector<8x128xf32>
    %289 = arith.mulf %288, %287 : vector<8x128xf32>
    %290 = math.tanh %289 : vector<8x128xf32>
    %cst_109 = arith.constant 5.000000e-01 : f32
    %291 = vector.broadcast %cst_109 : f32 to vector<8x128xf32>
    %292 = arith.mulf %291, %290 : vector<8x128xf32>
    %cst_110 = arith.constant 5.000000e-01 : f32
    %293 = vector.broadcast %cst_110 : f32 to vector<8x128xf32>
    %294 = arith.addf %292, %293 : vector<8x128xf32>
    %295 = arith.mulf %284, %261 : vector<8x128xf32>
    %296 = arith.mulf %276, %286 : vector<8x128xf32>
    %297 = arith.addf %295, %296 : vector<8x128xf32>
    %298 = math.tanh %297 : vector<8x128xf32>
    %299 = arith.mulf %294, %298 : vector<8x128xf32>
    %c8_i32 = arith.constant 8 : i32
    %c0_111 = arith.constant 0 : index
    %c0_112 = arith.constant 0 : index
    %300 = vector.load %arg4[%c0_111, %c0_112] : memref<128x256xf32, #tpu.memory_space<vmem>>, vector<128x256xf32>
    %cst_113 = arith.constant dense<0.000000e+00> : vector<8x256xf32>
    %301 = tpu.matmul %299, %300, %cst_113 {dimension_numbers = #tpu.dot_dimension_numbers<[1], [0], [0], [1], [0, 0, 1, 1], [], []>} : vector<8x128xf32>, vector<128x256xf32>, vector<8x256xf32> -> vector<8x256xf32>
    %c0_114 = arith.constant 0 : index
    %c0_115 = arith.constant 0 : index
    %302 = vector.load %arg5[%c0_114, %c0_115] : memref<1x256xf32, #tpu.memory_space<vmem>>, vector<1x256xf32>
    %303 = vector.broadcast %302 : vector<1x256xf32> to vector<8x256xf32>
    %304 = arith.addf %301, %303 : vector<8x256xf32>
    %305 = vector.extract_strided_slice %304 {offsets = [0, 0], sizes = [8, 128], strides = [1, 1]} : vector<8x256xf32> to vector<8x128xf32>
    %cst_116 = arith.constant dense<0xFF800000> : vector<8xf32>
    %306 = vector.multi_reduction <maximumf>, %305, %cst_116 [1] : vector<8x128xf32> to vector<8xf32>
    %307 = vector.shape_cast %306 : vector<8xf32> to vector<8x1xf32>
    %308 = vector.broadcast %307 : vector<8x1xf32> to vector<8x128xf32>
    %309 = arith.subf %305, %308 : vector<8x128xf32>
    %310 = math.exp %309 : vector<8x128xf32>
    %cst_117 = arith.constant dense<0.000000e+00> : vector<8xf32>
    %311 = vector.multi_reduction <add>, %310, %cst_117 [1] : vector<8x128xf32> to vector<8xf32>
    %312 = vector.shape_cast %311 : vector<8xf32> to vector<8x1xf32>
    %313 = vector.broadcast %312 : vector<8x1xf32> to vector<8x128xf32>
    %314 = arith.divf %310, %313 : vector<8x128xf32>
    %315 = vector.extract_strided_slice %304 {offsets = [0, 128], sizes = [8, 128], strides = [1, 1]} : vector<8x256xf32> to vector<8x128xf32>
    %316 = tpu.concatenate %314, %315 in 1 : vector<8x128xf32>, vector<8x128xf32> -> vector<8x256xf32>
    %c0_118 = arith.constant 0 : index
    %c0_119 = arith.constant 0 : index
    %317 = vector.load %arg8[%c0_118, %c0_119] : memref<8x256xf32, #tpu.memory_space<vmem>>, vector<8x256xf32>
    tpu.vector_store %arg8[%c0_118, %c0_119], %316 {strides = array<i32>} : memref<8x256xf32, #tpu.memory_space<vmem>>, vector<8x256xf32>,
    %c0_120 = arith.constant 0 : index
    %c0_121 = arith.constant 0 : index
    %318 = vector.load %arg9[%c0_120, %c0_121] : memref<8x128xf32, #tpu.memory_space<vmem>>, vector<8x128xf32>
    tpu.vector_store %arg9[%c0_120, %c0_121], %299 {strides = array<i32>} : memref<8x128xf32, #tpu.memory_space<vmem>>, vector<8x128xf32>,
    %c0_122 = arith.constant 0 : index
    %c0_123 = arith.constant 0 : index
    %319 = vector.load %arg10[%c0_122, %c0_123] : memref<8x128xf32, #tpu.memory_space<vmem>>, vector<8x128xf32>
    tpu.vector_store %arg10[%c0_122, %c0_123], %297 {strides = array<i32>} : memref<8x128xf32, #tpu.memory_space<vmem>>, vector<8x128xf32>,
    return
  }
}

</mosaic_0001>

<llo_original>
// kernel: actor_critic_rnn_forward.1
$region0: #{actor_critic_rnn_forward.1}
  #allocation0 [shape = 'u32[]', space=smem, size = 0x4, offset = 0x4, fixed_abs, tag = 'smem constant byte address 0x4 - core index']
  #allocation1 [shape = 'u32[144,128]{1,0:T(1,128)}', space=vmem, size = 0x12000, scoped, tag = 'internal scratch']
  #allocation2 [shape = 'f32[8,8,512]{2,1,0:T(8,128)}', space=vmem, size = 0x20000, scoped, tag = 'scratch operand']
  %s0 = inlined_call_operand.vmem [shape: f32[8,8,128], index: 0, kind: input, shape index: {}]
  %s1 = inlined_call_operand.vmem [shape: f32[128,512], index: 1, kind: input, shape index: {}]
  %s2 = inlined_call_operand.vmem [shape: f32[128,512], index: 2, kind: input, shape index: {}]
  %s3 = inlined_call_operand.vmem [shape: f32[1,512], index: 3, kind: input, shape index: {}]
  %s4 = inlined_call_operand.vmem [shape: f32[128,256], index: 4, kind: input, shape index: {}]
  %s5 = inlined_call_operand.vmem [shape: f32[1,256], index: 5, kind: input, shape index: {}]
  %s6 = inlined_call_operand.vmem [shape: f32[8,128], index: 6, kind: input, shape index: {}, may-alias: {6,7}]
  %s7 = inlined_call_operand.vmem [shape: f32[8,128], index: 7, kind: input, shape index: {}, may-alias: {6,7}]
  %s8 = inlined_call_operand.vmem [shape: f32[8,256], index: 8, kind: output, shape index: {0}]
  %s9 = inlined_call_operand.vmem [shape: f32[8,128], index: 9, kind: output, shape index: {1}]
  %s10 = inlined_call_operand.vmem [shape: f32[8,128], index: 10, kind: output, shape index: {2}]
  %11 = xla_tuple %s8, %s9, %s10
  %s12 = sld [smem:[#allocation0]]
  $region58: #{actor_critic_rnn_forward.1} parent=0
    _
  %s14 = ssub.s32 1, %s12
  %s15 = scalar_select 0, %s14, %s12
  // Predicated region
  $region2: #{actor_critic_rnn_forward.1} parent=0 // pred_check
    _
  $region3: #{actor_critic_rnn_forward.1} parent=0 // pred_check_branch
    %17 = sbr.rel (0) target = $region5
  $region4: #{actor_critic_rnn_forward.1} parent=0 // pred_region
    _
  $region5: #{actor_critic_rnn_forward.1} parent=0 // pred_fallthru
    _
  // Predicated region
  $region6: #{actor_critic_rnn_forward.1} parent=0 // pred_check
    _
  $region7: #{actor_critic_rnn_forward.1} parent=0 // pred_check_branch
    %19 = sbr.rel (0) target = $region9
  $region8: #{actor_critic_rnn_forward.1} parent=0 // pred_region
    _
  $region9: #{actor_critic_rnn_forward.1} parent=0 // pred_fallthru
    _
  // Predicated region
  $region10: #{actor_critic_rnn_forward.1} parent=0 // pred_check
    _
  $region11: #{actor_critic_rnn_forward.1} parent=0 // pred_check_branch
    %21 = sbr.rel (0) target = $region13
  $region12: #{actor_critic_rnn_forward.1} parent=0 // pred_region
    _
  $region13: #{actor_critic_rnn_forward.1} parent=0 // pred_fallthru
    _
  // Predicated region
  $region14: #{actor_critic_rnn_forward.1} parent=0 // pred_check
    _
  $region15: #{actor_critic_rnn_forward.1} parent=0 // pred_check_branch
    %23 = sbr.rel (0) target = $region17
  $region16: #{actor_critic_rnn_forward.1} parent=0 // pred_region
    _
  $region17: #{actor_critic_rnn_forward.1} parent=0 // pred_fallthru
    _
  // Predicated region
  $region18: #{actor_critic_rnn_forward.1} parent=0 // pred_check
    _
  $region19: #{actor_critic_rnn_forward.1} parent=0 // pred_check_branch
    %25 = sbr.rel (0) target = $region21
  $region20: #{actor_critic_rnn_forward.1} parent=0 // pred_region
    _
  $region21: #{actor_critic_rnn_forward.1} parent=0 // pred_fallthru
    _
  // Predicated region
  $region22: #{actor_critic_rnn_forward.1} parent=0 // pred_check
    _
  $region23: #{actor_critic_rnn_forward.1} parent=0 // pred_check_branch
    %27 = sbr.rel (0) target = $region25
  $region24: #{actor_critic_rnn_forward.1} parent=0 // pred_region
    _
  $region25: #{actor_critic_rnn_forward.1} parent=0 // pred_fallthru
    _
  // Predicated region
  $region26: #{actor_critic_rnn_forward.1} parent=0 // pred_check
    _
  $region27: #{actor_critic_rnn_forward.1} parent=0 // pred_check_branch
    %29 = sbr.rel (0) target = $region29
  $region28: #{actor_critic_rnn_forward.1} parent=0 // pred_region
    _
  $region29: #{actor_critic_rnn_forward.1} parent=0 // pred_fallthru
    _
  // Predicated region
  $region30: #{actor_critic_rnn_forward.1} parent=0 // pred_check
    _
  $region31: #{actor_critic_rnn_forward.1} parent=0 // pred_check_branch
    %31 = sbr.rel (0) target = $region33
  $region32: #{actor_critic_rnn_forward.1} parent=0 // pred_region
    _
  $region33: #{actor_critic_rnn_forward.1} parent=0 // pred_fallthru
    _
  %v32 = vld [vmem:[%s0] sm:$0xff]
  %v33 = vld [vmem:[%s0 + $0x8] sm:$0xff]
  %v34 = vld [vmem:[%s0 + $0x10] sm:$0xff]
  %v35 = vld [vmem:[%s0 + $0x18] sm:$0xff]
  %v36 = vld [vmem:[%s0 + $0x20] sm:$0xff]
  %v37 = vld [vmem:[%s0 + $0x28] sm:$0xff]
  %v38 = vld [vmem:[%s0 + $0x30] sm:$0xff]
  %v39 = vld [vmem:[%s0 + $0x38] sm:$0xff]
  %v40 = vld [vmem:[%s1] sm:$0xff]
  %v41 = vld [vmem:[%s1 + $0x8] sm:$0xff]
  %v42 = vld [vmem:[%s1 + $0x10] sm:$0xff]
  %v43 = vld [vmem:[%s1 + $0x18] sm:$0xff]
  %v44 = vld [vmem:[%s1 + $0x20] sm:$0xff]
  %v45 = vld [vmem:[%s1 + $0x28] sm:$0xff]
  %v46 = vld [vmem:[%s1 + $0x30] sm:$0xff]
  %v47 = vld [vmem:[%s1 + $0x38] sm:$0xff]
  %v48 = vld [vmem:[%s1 + $0x40] sm:$0xff]
  %v49 = vld [vmem:[%s1 + $0x48] sm:$0xff]
  %v50 = vld [vmem:[%s1 + $0x50] sm:$0xff]
  %v51 = vld [vmem:[%s1 + $0x58] sm:$0xff]
  %v52 = vld [vmem:[%s1 + $0x60] sm:$0xff]
  %v53 = vld [vmem:[%s1 + $0x68] sm:$0xff]
  %v54 = vld [vmem:[%s1 + $0x70] sm:$0xff]
  %v55 = vld [vmem:[%s1 + $0x78] sm:$0xff]
  %v56 = vld [vmem:[%s1 + $0x80] sm:$0xff]
  %v57 = vld [vmem:[%s1 + $0x88] sm:$0xff]
  %v58 = vld [vmem:[%s1 + $0x90] sm:$0xff]
  %v59 = vld [vmem:[%s1 + $0x98] sm:$0xff]
  %v60 = vld [vmem:[%s1 + $0xa0] sm:$0xff]
  %v61 = vld [vmem:[%s1 + $0xa8] sm:$0xff]
  %v62 = vld [vmem:[%s1 + $0xb0] sm:$0xff]
  %v63 = vld [vmem:[%s1 + $0xb8] sm:$0xff]
  %v64 = vld [vmem:[%s1 + $0xc0] sm:$0xff]
  %v65 = vld [vmem:[%s1 + $0xc8] sm:$0xff]
  %v66 = vld [vmem:[%s1 + $0xd0] sm:$0xff]
  %v67 = vld [vmem:[%s1 + $0xd8] sm:$0xff]
  %v68 = vld [vmem:[%s1 + $0xe0] sm:$0xff]
  %v69 = vld [vmem:[%s1 + $0xe8] sm:$0xff]
  %v70 = vld [vmem:[%s1 + $0xf0] sm:$0xff]
  %v71 = vld [vmem:[%s1 + $0xf8] sm:$0xff]
  %v72 = vld [vmem:[%s1 + $0x100] sm:$0xff]
  %v73 = vld [vmem:[%s1 + $0x108] sm:$0xff]
  %v74 = vld [vmem:[%s1 + $0x110] sm:$0xff]
  %v75 = vld [vmem:[%s1 + $0x118] sm:$0xff]
  %v76 = vld [vmem:[%s1 + $0x120] sm:$0xff]
  %v77 = vld [vmem:[%s1 + $0x128] sm:$0xff]
  %v78 = vld [vmem:[%s1 + $0x130] sm:$0xff]
  %v79 = vld [vmem:[%s1 + $0x138] sm:$0xff]
  %v80 = vld [vmem:[%s1 + $0x140] sm:$0xff]
  %v81 = vld [vmem:[%s1 + $0x148] sm:$0xff]
  %v82 = vld [vmem:[%s1 + $0x150] sm:$0xff]
  %v83 = vld [vmem:[%s1 + $0x158] sm:$0xff]
  %v84 = vld [vmem:[%s1 + $0x160] sm:$0xff]
  %v85 = vld [vmem:[%s1 + $0x168] sm:$0xff]
  %v86 = vld [vmem:[%s1 + $0x170] sm:$0xff]
  %v87 = vld [vmem:[%s1 + $0x178] sm:$0xff]
  %v88 = vld [vmem:[%s1 + $0x180] sm:$0xff]
  %v89 = vld [vmem:[%s1 + $0x188] sm:$0xff]
  %v90 = vld [vmem:[%s1 + $0x190] sm:$0xff]
  %v91 = vld [vmem:[%s1 + $0x198] sm:$0xff]
  %v92 = vld [vmem:[%s1 + $0x1a0] sm:$0xff]
  %v93 = vld [vmem:[%s1 + $0x1a8] sm:$0xff]
  %v94 = vld [vmem:[%s1 + $0x1b0] sm:$0xff]
  %v95 = vld [vmem:[%s1 + $0x1b8] sm:$0xff]
  %v96 = vld [vmem:[%s1 + $0x1c0] sm:$0xff]
  %v97 = vld [vmem:[%s1 + $0x1c8] sm:$0xff]
  %v98 = vld [vmem:[%s1 + $0x1d0] sm:$0xff]
  %v99 = vld [vmem:[%s1 + $0x1d8] sm:$0xff]
  %v100 = vld [vmem:[%s1 + $0x1e0] sm:$0xff]
  %v101 = vld [vmem:[%s1 + $0x1e8] sm:$0xff]
  %v102 = vld [vmem:[%s1 + $0x1f0] sm:$0xff]
  %v103 = vld [vmem:[%s1 + $0x1f8] sm:$0xff]
  %v104 = vld [vmem:[%s3] sm:$0xf]
  %v106 = vlaneseq
  %v107 = vshrl.u32 %v106, 7
  %v108 = vsub.s32 0, %v107
  %v109 = vrot.slane %v104, %v108
  %v110 = vlaneseq
  %v111 = vshrl.u32 %v110, 7
  %v112 = vsub.s32 1, %v111
  %v113 = vrot.slane %v104, %v112
  %v114 = vlaneseq
  %v115 = vshrl.u32 %v114, 7
  %v116 = vsub.s32 2, %v115
  %v117 = vrot.slane %v104, %v116
  %v118 = vlaneseq
  %v119 = vshrl.u32 %v118, 7
  %v120 = vsub.s32 3, %v119
  %v121 = vrot.slane %v104, %v120
  %126 = vmatprep.subr.mxu0 %v41
  %127 = vmatpush1.msra.mxu0 %v40
  %128 = vmatprep.subr.mxu0 %v45
  %129 = vmatpush1.msra.mxu0 %v44
  %130 = vmatprep.subr.mxu0 %v49
  %131 = vmatpush1.msra.mxu0 %v48
  %132 = vmatprep.subr.mxu0 %v53
  %133 = vmatpush1.msra.mxu0 %v52
  %134 = vmatprep.subr.mxu0 %v57
  %135 = vmatpush1.msra.mxu0 %v56
  %136 = vmatprep.subr.mxu0 %v61
  %137 = vmatpush1.msra.mxu0 %v60
  %138 = vmatprep.subr.mxu0 %v65
  %139 = vmatpush1.msra.mxu0 %v64
  %140 = vmatprep.subr.mxu0 %v69
  %141 = vmatpush1.msra.mxu0 %v68
  %142 = vmatprep.subr.mxu0 %v73
  %143 = vmatpush1.msra.mxu0 %v72
  %144 = vmatprep.subr.mxu0 %v77
  %145 = vmatpush1.msra.mxu0 %v76
  %146 = vmatprep.subr.mxu0 %v81
  %147 = vmatpush1.msra.mxu0 %v80
  %148 = vmatprep.subr.mxu0 %v85
  %149 = vmatpush1.msra.mxu0 %v84
  %150 = vmatprep.subr.mxu0 %v89
  %151 = vmatpush1.msra.mxu0 %v88
  %152 = vmatprep.subr.mxu0 %v93
  %153 = vmatpush1.msra.mxu0 %v92
  %154 = vmatprep.subr.mxu0 %v97
  %155 = vmatpush1.msra.mxu0 %v96
  %156 = vmatprep.subr.mxu0 %v101
  %157 = vmatpush1.msra.mxu0 %v100
  %158 = vmatprep.subr.mxu0 0.0
  %159 = vmatpush1.msra.mxu0 0.0
  %160 = vmatprep.subr.mxu0 0.0
  %161 = vmatpush1.msra.mxu0 0.0
  %162 = vmatprep.subr.mxu0 0.0
  %163 = vmatpush1.msra.mxu0 0.0
  %164 = vmatprep.subr.mxu0 0.0
  %165 = vmatpush1.msra.mxu0 0.0
  %166 = vmatprep.subr.mxu0 0.0
  %167 = vmatpush1.msra.mxu0 0.0
  %168 = vmatprep.subr.mxu0 0.0
  %169 = vmatpush1.msra.mxu0 0.0
  %170 = vmatprep.subr.mxu0 0.0
  %171 = vmatpush1.msra.mxu0 0.0
  %172 = vmatprep.subr.mxu0 0.0
  %173 = vmatpush1.msra.mxu0 0.0
  %174 = vmatprep.subr.mxu0 0.0
  %175 = vmatpush1.msra.mxu0 0.0
  %176 = vmatprep.subr.mxu0 0.0
  %177 = vmatpush1.msra.mxu0 0.0
  %178 = vmatprep.subr.mxu0 0.0
  %179 = vmatpush1.msra.mxu0 0.0
  %180 = vmatprep.subr.mxu0 0.0
  %181 = vmatpush1.msra.mxu0 0.0
  %182 = vmatprep.subr.mxu0 0.0
  %183 = vmatpush1.msra.mxu0 0.0
  %184 = vmatprep.subr.mxu0 0.0
  %185 = vmatpush1.msra.mxu0 0.0
  %186 = vmatprep.subr.mxu0 0.0
  %187 = vmatpush1.msra.mxu0 0.0
  %188 = vmatprep.subr.mxu0 0.0
  %189 = vmatpush1.msra.mxu0 0.0
  %190 = vmatprep.mubr.f32.mxu0 0.0
  %191 = vmatmul.mubr.f32.gmra.mrb[0].mxu0 %v32
  %v192 = vpop.f32.mrb[0].mxu0
  %v193 = vadd.f32 %v109, %v192
  %v194 = vpop.f32.mrb[0].mxu0
  %v195 = vadd.f32 %v113, %v194
  %196 = vmatprep.mubr.f32.mxu0 0.0
  %197 = vmatmul.mubr.f32.gmra.mrb[0].mxu0 %v33
  %v198 = vpop.f32.mrb[0].mxu0
  %v199 = vadd.f32 %v109, %v198
  %v200 = vpop.f32.mrb[0].mxu0
  %v201 = vadd.f32 %v113, %v200
  %202 = vmatprep.mubr.f32.mxu0 0.0
  %203 = vmatmul.mubr.f32.gmra.mrb[0].mxu0 %v34
  %v204 = vpop.f32.mrb[0].mxu0
  %v205 = vadd.f32 %v109, %v204
  %v206 = vpop.f32.mrb[0].mxu0
  %v207 = vadd.f32 %v113, %v206
  %208 = vmatprep.mubr.f32.mxu0 0.0
  %209 = vmatmul.mubr.f32.gmra.mrb[0].mxu0 %v35
  %v210 = vpop.f32.mrb[0].mxu0
  %v211 = vadd.f32 %v109, %v210
  %v212 = vpop.f32.mrb[0].mxu0
  %v213 = vadd.f32 %v113, %v212
  %214 = vmatprep.mubr.f32.mxu0 0.0
  %215 = vmatmul.mubr.f32.gmra.mrb[0].mxu0 %v36
  %v216 = vpop.f32.mrb[0].mxu0
  %v217 = vadd.f32 %v109, %v216
  %v218 = vpop.f32.mrb[0].mxu0
  %v219 = vadd.f32 %v113, %v218
  %220 = vmatprep.mubr.f32.mxu0 0.0
  %221 = vmatmul.mubr.f32.gmra.mrb[0].mxu0 %v37
  %v222 = vpop.f32.mrb[0].mxu0
  %v223 = vadd.f32 %v109, %v222
  %v224 = vpop.f32.mrb[0].mxu0
  %v225 = vadd.f32 %v113, %v224
  %226 = vmatprep.mubr.f32.mxu0 0.0
  %227 = vmatmul.mubr.f32.gmra.mrb[0].mxu0 %v38
  %v228 = vpop.f32.mrb[0].mxu0
  %v229 = vadd.f32 %v109, %v228
  %v230 = vpop.f32.mrb[0].mxu0
  %v231 = vadd.f32 %v113, %v230
  %232 = vmatprep.mubr.f32.mxu0 0.0
  %233 = vmatmul.mubr.f32.gmra.mrb[0].mxu0 %v39
  %v234 = vpop.f32.mrb[0].mxu0
  %v235 = vadd.f32 %v109, %v234
  %v236 = vpop.f32.mrb[0].mxu0
  %v237 = vadd.f32 %v113, %v236
  %238 = vdwg.mxu0
  %239 = vmatprep.subr.mxu0 %v43
  %240 = vmatpush1.msra.mxu0 %v42
  %241 = vmatprep.subr.mxu0 %v47
  %242 = vmatpush1.msra.mxu0 %v46
  %243 = vmatprep.subr.mxu0 %v51
  %244 = vmatpush1.msra.mxu0 %v50
  %245 = vmatprep.subr.mxu0 %v55
  %246 = vmatpush1.msra.mxu0 %v54
  %247 = vmatprep.subr.mxu0 %v59
  %248 = vmatpush1.msra.mxu0 %v58
  %249 = vmatprep.subr.mxu0 %v63
  %250 = vmatpush1.msra.mxu0 %v62
  %251 = vmatprep.subr.mxu0 %v67
  %252 = vmatpush1.msra.mxu0 %v66
  %253 = vmatprep.subr.mxu0 %v71
  %254 = vmatpush1.msra.mxu0 %v70
  %255 = vmatprep.subr.mxu0 %v75
  %256 = vmatpush1.msra.mxu0 %v74
  %257 = vmatprep.subr.mxu0 %v79
  %258 = vmatpush1.msra.mxu0 %v78
  %259 = vmatprep.subr.mxu0 %v83
  %260 = vmatpush1.msra.mxu0 %v82
  %261 = vmatprep.subr.mxu0 %v87
  %262 = vmatpush1.msra.mxu0 %v86
  %263 = vmatprep.subr.mxu0 %v91
  %264 = vmatpush1.msra.mxu0 %v90
  %265 = vmatprep.subr.mxu0 %v95
  %266 = vmatpush1.msra.mxu0 %v94
  %267 = vmatprep.subr.mxu0 %v99
  %268 = vmatpush1.msra.mxu0 %v98
  %269 = vmatprep.subr.mxu0 %v103
  %270 = vmatpush1.msra.mxu0 %v102
  %271 = vmatprep.subr.mxu0 0.0
  %272 = vmatpush1.msra.mxu0 0.0
  %273 = vmatprep.subr.mxu0 0.0
  %274 = vmatpush1.msra.mxu0 0.0
  %275 = vmatprep.subr.mxu0 0.0
  %276 = vmatpush1.msra.mxu0 0.0
  %277 = vmatprep.subr.mxu0 0.0
  %278 = vmatpush1.msra.mxu0 0.0
  %279 = vmatprep.subr.mxu0 0.0
  %280 = vmatpush1.msra.mxu0 0.0
  %281 = vmatprep.subr.mxu0 0.0
  %282 = vmatpush1.msra.mxu0 0.0
  %283 = vmatprep.subr.mxu0 0.0
  %284 = vmatpush1.msra.mxu0 0.0
  %285 = vmatprep.subr.mxu0 0.0
  %286 = vmatpush1.msra.mxu0 0.0
  %287 = vmatprep.subr.mxu0 0.0
  %288 = vmatpush1.msra.mxu0 0.0
  %289 = vmatprep.subr.mxu0 0.0
  %290 = vmatpush1.msra.mxu0 0.0
  %291 = vmatprep.subr.mxu0 0.0
  %292 = vmatpush1.msra.mxu0 0.0
  %293 = vmatprep.subr.mxu0 0.0
  %294 = vmatpush1.msra.mxu0 0.0
  %295 = vmatprep.subr.mxu0 0.0
  %296 = vmatpush1.msra.mxu0 0.0
  %297 = vmatprep.subr.mxu0 0.0
  %298 = vmatpush1.msra.mxu0 0.0
  %299 = vmatprep.subr.mxu0 0.0
  %300 = vmatpush1.msra.mxu0 0.0
  %301 = vmatprep.subr.mxu0 0.0
  %302 = vmatpush1.msra.mxu0 0.0
  %303 = vmatprep.mubr.f32.mxu0 0.0
  %304 = vmatmul.mubr.f32.gmra.mrb[0].mxu0 %v32
  %v305 = vpop.f32.mrb[0].mxu0
  %v306 = vadd.f32 %v117, %v305
  %v307 = vpop.f32.mrb[0].mxu0
  %v308 = vadd.f32 %v121, %v307
  %309 = vmatprep.mubr.f32.mxu0 0.0
  %310 = vmatmul.mubr.f32.gmra.mrb[0].mxu0 %v33
  %v311 = vpop.f32.mrb[0].mxu0
  %v312 = vadd.f32 %v117, %v311
  %v313 = vpop.f32.mrb[0].mxu0
  %v314 = vadd.f32 %v121, %v313
  %315 = vmatprep.mubr.f32.mxu0 0.0
  %316 = vmatmul.mubr.f32.gmra.mrb[0].mxu0 %v34
  %v317 = vpop.f32.mrb[0].mxu0
  %v318 = vadd.f32 %v117, %v317
  %v319 = vpop.f32.mrb[0].mxu0
  %v320 = vadd.f32 %v121, %v319
  %321 = vmatprep.mubr.f32.mxu0 0.0
  %322 = vmatmul.mubr.f32.gmra.mrb[0].mxu0 %v35
  %v323 = vpop.f32.mrb[0].mxu0
  %v324 = vadd.f32 %v117, %v323
  %v325 = vpop.f32.mrb[0].mxu0
  %v326 = vadd.f32 %v121, %v325
  %327 = vmatprep.mubr.f32.mxu0 0.0
  %328 = vmatmul.mubr.f32.gmra.mrb[0].mxu0 %v36
  %v329 = vpop.f32.mrb[0].mxu0
  %v330 = vadd.f32 %v117, %v329
  %v331 = vpop.f32.mrb[0].mxu0
  %v332 = vadd.f32 %v121, %v331
  %333 = vmatprep.mubr.f32.mxu0 0.0
  %334 = vmatmul.mubr.f32.gmra.mrb[0].mxu0 %v37
  %v335 = vpop.f32.mrb[0].mxu0
  %v336 = vadd.f32 %v117, %v335
  %v337 = vpop.f32.mrb[0].mxu0
  %v338 = vadd.f32 %v121, %v337
  %339 = vmatprep.mubr.f32.mxu0 0.0
  %340 = vmatmul.mubr.f32.gmra.mrb[0].mxu0 %v38
  %v341 = vpop.f32.mrb[0].mxu0
  %v342 = vadd.f32 %v117, %v341
  %v343 = vpop.f32.mrb[0].mxu0
  %v344 = vadd.f32 %v121, %v343
  %345 = vmatprep.mubr.f32.mxu0 0.0
  %346 = vmatmul.mubr.f32.gmra.mrb[0].mxu0 %v39
  %v347 = vpop.f32.mrb[0].mxu0
  %v348 = vadd.f32 %v117, %v347
  %v349 = vpop.f32.mrb[0].mxu0
  %v350 = vadd.f32 %v121, %v349
  %351 = vdwg.mxu0
  %352 = vst [vmem:[#allocation2] sm:$0xff] %v193
  %353 = vst [vmem:[#allocation2 + $0x8] sm:$0xff] %v195
  %354 = vst [vmem:[#allocation2 + $0x10] sm:$0xff] %v306
  %355 = vst [vmem:[#allocation2 + $0x18] sm:$0xff] %v308
  %356 = vst [vmem:[#allocation2 + $0x20] sm:$0xff] %v199
  %357 = vst [vmem:[#allocation2 + $0x28] sm:$0xff] %v201
  %358 = vst [vmem:[#allocation2 + $0x30] sm:$0xff] %v312
  %359 = vst [vmem:[#allocation2 + $0x38] sm:$0xff] %v314
  %360 = vst [vmem:[#allocation2 + $0x40] sm:$0xff] %v205
  %361 = vst [vmem:[#allocation2 + $0x48] sm:$0xff] %v207
  %362 = vst [vmem:[#allocation2 + $0x50] sm:$0xff] %v318
  %363 = vst [vmem:[#allocation2 + $0x58] sm:$0xff] %v320
  %364 = vst [vmem:[#allocation2 + $0x60] sm:$0xff] %v211
  %365 = vst [vmem:[#allocation2 + $0x68] sm:$0xff] %v213
  %366 = vst [vmem:[#allocation2 + $0x70] sm:$0xff] %v324
  %367 = vst [vmem:[#allocation2 + $0x78] sm:$0xff] %v326
  %368 = vst [vmem:[#allocation2 + $0x80] sm:$0xff] %v217
  %369 = vst [vmem:[#allocation2 + $0x88] sm:$0xff] %v219
  %370 = vst [vmem:[#allocation2 + $0x90] sm:$0xff] %v330
  %371 = vst [vmem:[#allocation2 + $0x98] sm:$0xff] %v332
  %372 = vst [vmem:[#allocation2 + $0xa0] sm:$0xff] %v223
  %373 = vst [vmem:[#allocation2 + $0xa8] sm:$0xff] %v225
  %374 = vst [vmem:[#allocation2 + $0xb0] sm:$0xff] %v336
  %375 = vst [vmem:[#allocation2 + $0xb8] sm:$0xff] %v338
  %376 = vst [vmem:[#allocation2 + $0xc0] sm:$0xff] %v229
  %377 = vst [vmem:[#allocation2 + $0xc8] sm:$0xff] %v231
  %378 = vst [vmem:[#allocation2 + $0xd0] sm:$0xff] %v342
  %379 = vst [vmem:[#allocation2 + $0xd8] sm:$0xff] %v344
  %380 = vst [vmem:[#allocation2 + $0xe0] sm:$0xff] %v235
  %381 = vst [vmem:[#allocation2 + $0xe8] sm:$0xff] %v237
  %382 = vst [vmem:[#allocation2 + $0xf0] sm:$0xff] %v348
  %383 = vst [vmem:[#allocation2 + $0xf8] sm:$0xff] %v350
  %v384 = vld [vmem:[%s2] sm:$0xff]
  %v385 = vld [vmem:[%s2 + $0x8] sm:$0xff]
  %v386 = vld [vmem:[%s2 + $0x10] sm:$0xff]
  %v387 = vld [vmem:[%s2 + $0x18] sm:$0xff]
  %v388 = vld [vmem:[%s2 + $0x20] sm:$0xff]
  %v389 = vld [vmem:[%s2 + $0x28] sm:$0xff]
  %v390 = vld [vmem:[%s2 + $0x30] sm:$0xff]
  %v391 = vld [vmem:[%s2 + $0x38] sm:$0xff]
  %v392 = vld [vmem:[%s2 + $0x40] sm:$0xff]
  %v393 = vld [vmem:[%s2 + $0x48] sm:$0xff]
  %v394 = vld [vmem:[%s2 + $0x50] sm:$0xff]
  %v395 = vld [vmem:[%s2 + $0x58] sm:$0xff]
  %v396 = vld [vmem:[%s2 + $0x60] sm:$0xff]
  %v397 = vld [vmem:[%s2 + $0x68] sm:$0xff]
  %v398 = vld [vmem:[%s2 + $0x70] sm:$0xff]
  %v399 = vld [vmem:[%s2 + $0x78] sm:$0xff]
  %v400 = vld [vmem:[%s2 + $0x80] sm:$0xff]
  %v401 = vld [vmem:[%s2 + $0x88] sm:$0xff]
  %v402 = vld [vmem:[%s2 + $0x90] sm:$0xff]
  %v403 = vld [vmem:[%s2 + $0x98] sm:$0xff]
  %v404 = vld [vmem:[%s2 + $0xa0] sm:$0xff]
  %v405 = vld [vmem:[%s2 + $0xa8] sm:$0xff]
  %v406 = vld [vmem:[%s2 + $0xb0] sm:$0xff]
  %v407 = vld [vmem:[%s2 + $0xb8] sm:$0xff]
  %v408 = vld [vmem:[%s2 + $0xc0] sm:$0xff]
  %v409 = vld [vmem:[%s2 + $0xc8] sm:$0xff]
  %v410 = vld [vmem:[%s2 + $0xd0] sm:$0xff]
  %v411 = vld [vmem:[%s2 + $0xd8] sm:$0xff]
  %v412 = vld [vmem:[%s2 + $0xe0] sm:$0xff]
  %v413 = vld [vmem:[%s2 + $0xe8] sm:$0xff]
  %v414 = vld [vmem:[%s2 + $0xf0] sm:$0xff]
  %v415 = vld [vmem:[%s2 + $0xf8] sm:$0xff]
  %v416 = vld [vmem:[%s2 + $0x100] sm:$0xff]
  %v417 = vld [vmem:[%s2 + $0x108] sm:$0xff]
  %v418 = vld [vmem:[%s2 + $0x110] sm:$0xff]
  %v419 = vld [vmem:[%s2 + $0x118] sm:$0xff]
  %v420 = vld [vmem:[%s2 + $0x120] sm:$0xff]
  %v421 = vld [vmem:[%s2 + $0x128] sm:$0xff]
  %v422 = vld [vmem:[%s2 + $0x130] sm:$0xff]
  %v423 = vld [vmem:[%s2 + $0x138] sm:$0xff]
  %v424 = vld [vmem:[%s2 + $0x140] sm:$0xff]
  %v425 = vld [vmem:[%s2 + $0x148] sm:$0xff]
  %v426 = vld [vmem:[%s2 + $0x150] sm:$0xff]
  %v427 = vld [vmem:[%s2 + $0x158] sm:$0xff]
  %v428 = vld [vmem:[%s2 + $0x160] sm:$0xff]
  %v429 = vld [vmem:[%s2 + $0x168] sm:$0xff]
  %v430 = vld [vmem:[%s2 + $0x170] sm:$0xff]
  %v431 = vld [vmem:[%s2 + $0x178] sm:$0xff]
  %v432 = vld [vmem:[%s2 + $0x180] sm:$0xff]
  %v433 = vld [vmem:[%s2 + $0x188] sm:$0xff]
  %v434 = vld [vmem:[%s2 + $0x190] sm:$0xff]
  %v435 = vld [vmem:[%s2 + $0x198] sm:$0xff]
  %v436 = vld [vmem:[%s2 + $0x1a0] sm:$0xff]
  %v437 = vld [vmem:[%s2 + $0x1a8] sm:$0xff]
  %v438 = vld [vmem:[%s2 + $0x1b0] sm:$0xff]
  %v439 = vld [vmem:[%s2 + $0x1b8] sm:$0xff]
  %v440 = vld [vmem:[%s2 + $0x1c0] sm:$0xff]
  %v441 = vld [vmem:[%s2 + $0x1c8] sm:$0xff]
  %v442 = vld [vmem:[%s2 + $0x1d0] sm:$0xff]
  %v443 = vld [vmem:[%s2 + $0x1d8] sm:$0xff]
  %v444 = vld [vmem:[%s2 + $0x1e0] sm:$0xff]
  %v445 = vld [vmem:[%s2 + $0x1e8] sm:$0xff]
  %v446 = vld [vmem:[%s2 + $0x1f0] sm:$0xff]
  %v447 = vld [vmem:[%s2 + $0x1f8] sm:$0xff]
  %v448 = vld [vmem:[%s6] sm:$0xff]
  %v449 = vld [vmem:[%s7] sm:$0xff]
  %v450 = vld [vmem:[#allocation2] sm:$0xff]
  %v451 = vld [vmem:[#allocation2 + $0x8] sm:$0xff]
  %v452 = vld [vmem:[#allocation2 + $0x10] sm:$0xff]
  %v453 = vld [vmem:[#allocation2 + $0x18] sm:$0xff]
  %454 = vmatprep.subr.mxu0 %v385
  %455 = vmatpush1.msra.mxu0 %v384
  %456 = vmatprep.subr.mxu0 %v389
  %457 = vmatpush1.msra.mxu0 %v388
  %458 = vmatprep.subr.mxu0 %v393
  %459 = vmatpush1.msra.mxu0 %v392
  %460 = vmatprep.subr.mxu0 %v397
  %461 = vmatpush1.msra.mxu0 %v396
  %462 = vmatprep.subr.mxu0 %v401
  %463 = vmatpush1.msra.mxu0 %v400
  %464 = vmatprep.subr.mxu0 %v405
  %465 = vmatpush1.msra.mxu0 %v404
  %466 = vmatprep.subr.mxu0 %v409
  %467 = vmatpush1.msra.mxu0 %v408
  %468 = vmatprep.subr.mxu0 %v413
  %469 = vmatpush1.msra.mxu0 %v412
  %470 = vmatprep.subr.mxu0 %v417
  %471 = vmatpush1.msra.mxu0 %v416
  %472 = vmatprep.subr.mxu0 %v421
  %473 = vmatpush1.msra.mxu0 %v420
  %474 = vmatprep.subr.mxu0 %v425
  %475 = vmatpush1.msra.mxu0 %v424
  %476 = vmatprep.subr.mxu0 %v429
  %477 = vmatpush1.msra.mxu0 %v428
  %478 = vmatprep.subr.mxu0 %v433
  %479 = vmatpush1.msra.mxu0 %v432
  %480 = vmatprep.subr.mxu0 %v437
  %481 = vmatpush1.msra.mxu0 %v436
  %482 = vmatprep.subr.mxu0 %v441
  %483 = vmatpush1.msra.mxu0 %v440
  %484 = vmatprep.subr.mxu0 %v445
  %485 = vmatpush1.msra.mxu0 %v444
  %486 = vmatprep.subr.mxu0 0.0
  %487 = vmatpush1.msra.mxu0 0.0
  %488 = vmatprep.subr.mxu0 0.0
  %489 = vmatpush1.msra.mxu0 0.0
  %490 = vmatprep.subr.mxu0 0.0
  %491 = vmatpush1.msra.mxu0 0.0
  %492 = vmatprep.subr.mxu0 0.0
  %493 = vmatpush1.msra.mxu0 0.0
  %494 = vmatprep.subr.mxu0 0.0
  %495 = vmatpush1.msra.mxu0 0.0
  %496 = vmatprep.subr.mxu0 0.0
  %497 = vmatpush1.msra.mxu0 0.0
  %498 = vmatprep.subr.mxu0 0.0
  %499 = vmatpush1.msra.mxu0 0.0
  %500 = vmatprep.subr.mxu0 0.0
  %501 = vmatpush1.msra.mxu0 0.0
  %502 = vmatprep.subr.mxu0 0.0
  %503 = vmatpush1.msra.mxu0 0.0
  %504 = vmatprep.subr.mxu0 0.0
  %505 = vmatpush1.msra.mxu0 0.0
  %506 = vmatprep.subr.mxu0 0.0
  %507 = vmatpush1.msra.mxu0 0.0
  %508 = vmatprep.subr.mxu0 0.0
  %509 = vmatpush1.msra.mxu0 0.0
  %510 = vmatprep.subr.mxu0 0.0
  %511 = vmatpush1.msra.mxu0 0.0
  %512 = vmatprep.subr.mxu0 0.0
  %513 = vmatpush1.msra.mxu0 0.0
  %514 = vmatprep.subr.mxu0 0.0
  %515 = vmatpush1.msra.mxu0 0.0
  %516 = vmatprep.subr.mxu0 0.0
  %517 = vmatpush1.msra.mxu0 0.0
  %518 = vmatprep.mubr.f32.mxu0 0.0
  %519 = vmatmul.mubr.f32.gmra.mrb[0].mxu0 %v448
  %v520 = vpop.f32.mrb[0].mxu0
  %v521 = vadd.f32 0.0, %v520
  %v522 = vpop.f32.mrb[0].mxu0
  %v523 = vadd.f32 0.0, %v522
  %524 = vdwg.mxu0
  %525 = vmatprep.subr.mxu0 %v387
  %526 = vmatpush1.msra.mxu0 %v386
  %527 = vmatprep.subr.mxu0 %v391
  %528 = vmatpush1.msra.mxu0 %v390
  %529 = vmatprep.subr.mxu0 %v395
  %530 = vmatpush1.msra.mxu0 %v394
  %531 = vmatprep.subr.mxu0 %v399
  %532 = vmatpush1.msra.mxu0 %v398
  %533 = vmatprep.subr.mxu0 %v403
  %534 = vmatpush1.msra.mxu0 %v402
  %535 = vmatprep.subr.mxu0 %v407
  %536 = vmatpush1.msra.mxu0 %v406
  %537 = vmatprep.subr.mxu0 %v411
  %538 = vmatpush1.msra.mxu0 %v410
  %539 = vmatprep.subr.mxu0 %v415
  %540 = vmatpush1.msra.mxu0 %v414
  %541 = vmatprep.subr.mxu0 %v419
  %542 = vmatpush1.msra.mxu0 %v418
  %543 = vmatprep.subr.mxu0 %v423
  %544 = vmatpush1.msra.mxu0 %v422
  %545 = vmatprep.subr.mxu0 %v427
  %546 = vmatpush1.msra.mxu0 %v426
  %547 = vmatprep.subr.mxu0 %v431
  %548 = vmatpush1.msra.mxu0 %v430
  %549 = vmatprep.subr.mxu0 %v435
  %550 = vmatpush1.msra.mxu0 %v434
  %551 = vmatprep.subr.mxu0 %v439
  %552 = vmatpush1.msra.mxu0 %v438
  %553 = vmatprep.subr.mxu0 %v443
  %554 = vmatpush1.msra.mxu0 %v442
  %555 = vmatprep.subr.mxu0 %v447
  %556 = vmatpush1.msra.mxu0 %v446
  %557 = vmatprep.subr.mxu0 0.0
  %558 = vmatpush1.msra.mxu0 0.0
  %559 = vmatprep.subr.mxu0 0.0
  %560 = vmatpush1.msra.mxu0 0.0
  %561 = vmatprep.subr.mxu0 0.0
  %562 = vmatpush1.msra.mxu0 0.0
  %563 = vmatprep.subr.mxu0 0.0
  %564 = vmatpush1.msra.mxu0 0.0
  %565 = vmatprep.subr.mxu0 0.0
  %566 = vmatpush1.msra.mxu0 0.0
  %567 = vmatprep.subr.mxu0 0.0
  %568 = vmatpush1.msra.mxu0 0.0
  %569 = vmatprep.subr.mxu0 0.0
  %570 = vmatpush1.msra.mxu0 0.0
  %571 = vmatprep.subr.mxu0 0.0
  %572 = vmatpush1.msra.mxu0 0.0
  %573 = vmatprep.subr.mxu0 0.0
  %574 = vmatpush1.msra.mxu0 0.0
  %575 = vmatprep.subr.mxu0 0.0
  %576 = vmatpush1.msra.mxu0 0.0
  %577 = vmatprep.subr.mxu0 0.0
  %578 = vmatpush1.msra.mxu0 0.0
  %579 = vmatprep.subr.mxu0 0.0
  %580 = vmatpush1.msra.mxu0 0.0
  %581 = vmatprep.subr.mxu0 0.0
  %582 = vmatpush1.msra.mxu0 0.0
  %583 = vmatprep.subr.mxu0 0.0
  %584 = vmatpush1.msra.mxu0 0.0
  %585 = vmatprep.subr.mxu0 0.0
  %586 = vmatpush1.msra.mxu0 0.0
  %587 = vmatprep.subr.mxu0 0.0
  %588 = vmatpush1.msra.mxu0 0.0
  %589 = vmatprep.mubr.f32.mxu0 0.0
  %590 = vmatmul.mubr.f32.gmra.mrb[0].mxu0 %v448
  %v591 = vpop.f32.mrb[0].mxu0
  %v592 = vadd.f32 0.0, %v591
  %v593 = vpop.f32.mrb[0].mxu0
  %v594 = vadd.f32 0.0, %v593
  %595 = vdwg.mxu0
  %v596 = vadd.f32 %v450, %v521
  %v597 = vadd.f32 %v451, %v523
  %v598 = vadd.f32 %v452, %v592
  %v599 = vadd.f32 %v453, %v594
  %v600 = vmul.f32 %v596, 0.5
  %v601 = vtanh.pop %v600
  %v602 = vmul.f32 %v601, 0.5
  %v603 = vadd.f32 %v602, 0.5
  %v604 = vmul.f32 %v597, 0.5
  %v605 = vtanh.pop %v604
  %v606 = vmul.f32 %v605, 0.5
  %v607 = vadd.f32 %v606, 0.5
  %v608 = vtanh.pop %v598
  %v609 = vmul.f32 %v599, 0.5
  %v610 = vtanh.pop %v609
  %v611 = vmul.f32 %v610, 0.5
  %v612 = vadd.f32 %v611, 0.5
  %v613 = vmul.f32 %v607, %v449
  %v614 = vmul.f32 %v603, %v608
  %v615 = vadd.f32 %v613, %v614
  %v616 = vtanh.pop %v615
  %v617 = vmul.f32 %v612, %v616
  %s618 = scalar_lea.vmem [#allocation2], 32
  %v619 = vld [vmem:[%s618] sm:$0xff]
  %v620 = vld [vmem:[%s618 + $0x8] sm:$0xff]
  %v621 = vld [vmem:[%s618 + $0x10] sm:$0xff]
  %v622 = vld [vmem:[%s618 + $0x18] sm:$0xff]
  %623 = vmatprep.subr.mxu0 %v385
  %624 = vmatpush1.msra.mxu0 %v384
  %625 = vmatprep.subr.mxu0 %v389
  %626 = vmatpush1.msra.mxu0 %v388
  %627 = vmatprep.subr.mxu0 %v393
  %628 = vmatpush1.msra.mxu0 %v392
  %629 = vmatprep.subr.mxu0 %v397
  %630 = vmatpush1.msra.mxu0 %v396
  %631 = vmatprep.subr.mxu0 %v401
  %632 = vmatpush1.msra.mxu0 %v400
  %633 = vmatprep.subr.mxu0 %v405
  %634 = vmatpush1.msra.mxu0 %v404
  %635 = vmatprep.subr.mxu0 %v409
  %636 = vmatpush1.msra.mxu0 %v408
  %637 = vmatprep.subr.mxu0 %v413
  %638 = vmatpush1.msra.mxu0 %v412
  %639 = vmatprep.subr.mxu0 %v417
  %640 = vmatpush1.msra.mxu0 %v416
  %641 = vmatprep.subr.mxu0 %v421
  %642 = vmatpush1.msra.mxu0 %v420
  %643 = vmatprep.subr.mxu0 %v425
  %644 = vmatpush1.msra.mxu0 %v424
  %645 = vmatprep.subr.mxu0 %v429
  %646 = vmatpush1.msra.mxu0 %v428
  %647 = vmatprep.subr.mxu0 %v433
  %648 = vmatpush1.msra.mxu0 %v432
  %649 = vmatprep.subr.mxu0 %v437
  %650 = vmatpush1.msra.mxu0 %v436
  %651 = vmatprep.subr.mxu0 %v441
  %652 = vmatpush1.msra.mxu0 %v440
  %653 = vmatprep.subr.mxu0 %v445
  %654 = vmatpush1.msra.mxu0 %v444
  %655 = vmatprep.subr.mxu0 0.0
  %656 = vmatpush1.msra.mxu0 0.0
  %657 = vmatprep.subr.mxu0 0.0
  %658 = vmatpush1.msra.mxu0 0.0
  %659 = vmatprep.subr.mxu0 0.0
  %660 = vmatpush1.msra.mxu0 0.0
  %661 = vmatprep.subr.mxu0 0.0
  %662 = vmatpush1.msra.mxu0 0.0
  %663 = vmatprep.subr.mxu0 0.0
  %664 = vmatpush1.msra.mxu0 0.0
  %665 = vmatprep.subr.mxu0 0.0
  %666 = vmatpush1.msra.mxu0 0.0
  %667 = vmatprep.subr.mxu0 0.0
  %668 = vmatpush1.msra.mxu0 0.0
  %669 = vmatprep.subr.mxu0 0.0
  %670 = vmatpush1.msra.mxu0 0.0
  %671 = vmatprep.subr.mxu0 0.0
  %672 = vmatpush1.msra.mxu0 0.0
  %673 = vmatprep.subr.mxu0 0.0
  %674 = vmatpush1.msra.mxu0 0.0
  %675 = vmatprep.subr.mxu0 0.0
  %676 = vmatpush1.msra.mxu0 0.0
  %677 = vmatprep.subr.mxu0 0.0
  %678 = vmatpush1.msra.mxu0 0.0
  %679 = vmatprep.subr.mxu0 0.0
  %680 = vmatpush1.msra.mxu0 0.0
  %681 = vmatprep.subr.mxu0 0.0
  %682 = vmatpush1.msra.mxu0 0.0
  %683 = vmatprep.subr.mxu0 0.0
  %684 = vmatpush1.msra.mxu0 0.0
  %685 = vmatprep.subr.mxu0 0.0
  %686 = vmatpush1.msra.mxu0 0.0
  %687 = vmatprep.mubr.f32.mxu0 0.0
  %688 = vmatmul.mubr.f32.gmra.mrb[0].mxu0 %v617
  %v689 = vpop.f32.mrb[0].mxu0
  %v690 = vadd.f32 0.0, %v689
  %v691 = vpop.f32.mrb[0].mxu0
  %v692 = vadd.f32 0.0, %v691
  %693 = vdwg.mxu0
  %694 = vmatprep.subr.mxu0 %v387
  %695 = vmatpush1.msra.mxu0 %v386
  %696 = vmatprep.subr.mxu0 %v391
  %697 = vmatpush1.msra.mxu0 %v390
  %698 = vmatprep.subr.mxu0 %v395
  %699 = vmatpush1.msra.mxu0 %v394
  %700 = vmatprep.subr.mxu0 %v399
  %701 = vmatpush1.msra.mxu0 %v398
  %702 = vmatprep.subr.mxu0 %v403
  %703 = vmatpush1.msra.mxu0 %v402
  %704 = vmatprep.subr.mxu0 %v407
  %705 = vmatpush1.msra.mxu0 %v406
  %706 = vmatprep.subr.mxu0 %v411
  %707 = vmatpush1.msra.mxu0 %v410
  %708 = vmatprep.subr.mxu0 %v415
  %709 = vmatpush1.msra.mxu0 %v414
  %710 = vmatprep.subr.mxu0 %v419
  %711 = vmatpush1.msra.mxu0 %v418
  %712 = vmatprep.subr.mxu0 %v423
  %713 = vmatpush1.msra.mxu0 %v422
  %714 = vmatprep.subr.mxu0 %v427
  %715 = vmatpush1.msra.mxu0 %v426
  %716 = vmatprep.subr.mxu0 %v431
  %717 = vmatpush1.msra.mxu0 %v430
  %718 = vmatprep.subr.mxu0 %v435
  %719 = vmatpush1.msra.mxu0 %v434
  %720 = vmatprep.subr.mxu0 %v439
  %721 = vmatpush1.msra.mxu0 %v438
  %722 = vmatprep.subr.mxu0 %v443
  %723 = vmatpush1.msra.mxu0 %v442
  %724 = vmatprep.subr.mxu0 %v447
  %725 = vmatpush1.msra.mxu0 %v446
  %726 = vmatprep.subr.mxu0 0.0
  %727 = vmatpush1.msra.mxu0 0.0
  %728 = vmatprep.subr.mxu0 0.0
  %729 = vmatpush1.msra.mxu0 0.0
  %730 = vmatprep.subr.mxu0 0.0
  %731 = vmatpush1.msra.mxu0 0.0
  %732 = vmatprep.subr.mxu0 0.0
  %733 = vmatpush1.msra.mxu0 0.0
  %734 = vmatprep.subr.mxu0 0.0
  %735 = vmatpush1.msra.mxu0 0.0
  %736 = vmatprep.subr.mxu0 0.0
  %737 = vmatpush1.msra.mxu0 0.0
  %738 = vmatprep.subr.mxu0 0.0
  %739 = vmatpush1.msra.mxu0 0.0
  %740 = vmatprep.subr.mxu0 0.0
  %741 = vmatpush1.msra.mxu0 0.0
  %742 = vmatprep.subr.mxu0 0.0
  %743 = vmatpush1.msra.mxu0 0.0
  %744 = vmatprep.subr.mxu0 0.0
  %745 = vmatpush1.msra.mxu0 0.0
  %746 = vmatprep.subr.mxu0 0.0
  %747 = vmatpush1.msra.mxu0 0.0
  %748 = vmatprep.subr.mxu0 0.0
  %749 = vmatpush1.msra.mxu0 0.0
  %750 = vmatprep.subr.mxu0 0.0
  %751 = vmatpush1.msra.mxu0 0.0
  %752 = vmatprep.subr.mxu0 0.0
  %753 = vmatpush1.msra.mxu0 0.0
  %754 = vmatprep.subr.mxu0 0.0
  %755 = vmatpush1.msra.mxu0 0.0
  %756 = vmatprep.subr.mxu0 0.0
  %757 = vmatpush1.msra.mxu0 0.0
  %758 = vmatprep.mubr.f32.mxu0 0.0
  %759 = vmatmul.mubr.f32.gmra.mrb[0].mxu0 %v617
  %v760 = vpop.f32.mrb[0].mxu0
  %v761 = vadd.f32 0.0, %v760
  %v762 = vpop.f32.mrb[0].mxu0
  %v763 = vadd.f32 0.0, %v762
  %764 = vdwg.mxu0
  %v765 = vadd.f32 %v619, %v690
  %v766 = vadd.f32 %v620, %v692
  %v767 = vadd.f32 %v621, %v761
  %v768 = vadd.f32 %v622, %v763
  %v769 = vmul.f32 %v765, 0.5
  %v770 = vtanh.pop %v769
  %v771 = vmul.f32 %v770, 0.5
  %v772 = vadd.f32 %v771, 0.5
  %v773 = vmul.f32 %v766, 0.5
  %v774 = vtanh.pop %v773
  %v775 = vmul.f32 %v774, 0.5
  %v776 = vadd.f32 %v775, 0.5
  %v777 = vtanh.pop %v767
  %v778 = vmul.f32 %v768, 0.5
  %v779 = vtanh.pop %v778
  %v780 = vmul.f32 %v779, 0.5
  %v781 = vadd.f32 %v780, 0.5
  %v782 = vmul.f32 %v776, %v615
  %v783 = vmul.f32 %v772, %v777
  %v784 = vadd.f32 %v782, %v783
  %v785 = vtanh.pop %v784
  %v786 = vmul.f32 %v781, %v785
  %s787 = scalar_lea.vmem [#allocation2], 64
  %v788 = vld [vmem:[%s787] sm:$0xff]
  %v789 = vld [vmem:[%s787 + $0x8] sm:$0xff]
  %v790 = vld [vmem:[%s787 + $0x10] sm:$0xff]
  %v791 = vld [vmem:[%s787 + $0x18] sm:$0xff]
  %792 = vmatprep.subr.mxu0 %v385
  %793 = vmatpush1.msra.mxu0 %v384
  %794 = vmatprep.subr.mxu0 %v389
  %795 = vmatpush1.msra.mxu0 %v388
  %796 = vmatprep.subr.mxu0 %v393
  %797 = vmatpush1.msra.mxu0 %v392
  %798 = vmatprep.subr.mxu0 %v397
  %799 = vmatpush1.msra.mxu0 %v396
  %800 = vmatprep.subr.mxu0 %v401
  %801 = vmatpush1.msra.mxu0 %v400
  %802 = vmatprep.subr.mxu0 %v405
  %803 = vmatpush1.msra.mxu0 %v404
  %804 = vmatprep.subr.mxu0 %v409
  %805 = vmatpush1.msra.mxu0 %v408
  %806 = vmatprep.subr.mxu0 %v413
  %807 = vmatpush1.msra.mxu0 %v412
  %808 = vmatprep.subr.mxu0 %v417
  %809 = vmatpush1.msra.mxu0 %v416
  %810 = vmatprep.subr.mxu0 %v421
  %811 = vmatpush1.msra.mxu0 %v420
  %812 = vmatprep.subr.mxu0 %v425
  %813 = vmatpush1.msra.mxu0 %v424
  %814 = vmatprep.subr.mxu0 %v429
  %815 = vmatpush1.msra.mxu0 %v428
  %816 = vmatprep.subr.mxu0 %v433
  %817 = vmatpush1.msra.mxu0 %v432
  %818 = vmatprep.subr.mxu0 %v437
  %819 = vmatpush1.msra.mxu0 %v436
  %820 = vmatprep.subr.mxu0 %v441
  %821 = vmatpush1.msra.mxu0 %v440
  %822 = vmatprep.subr.mxu0 %v445
  %823 = vmatpush1.msra.mxu0 %v444
  %824 = vmatprep.subr.mxu0 0.0
  %825 = vmatpush1.msra.mxu0 0.0
  %826 = vmatprep.subr.mxu0 0.0
  %827 = vmatpush1.msra.mxu0 0.0
  %828 = vmatprep.subr.mxu0 0.0
  %829 = vmatpush1.msra.mxu0 0.0
  %830 = vmatprep.subr.mxu0 0.0
  %831 = vmatpush1.msra.mxu0 0.0
  %832 = vmatprep.subr.mxu0 0.0
  %833 = vmatpush1.msra.mxu0 0.0
  %834 = vmatprep.subr.mxu0 0.0
  %835 = vmatpush1.msra.mxu0 0.0
  %836 = vmatprep.subr.mxu0 0.0
  %837 = vmatpush1.msra.mxu0 0.0
  %838 = vmatprep.subr.mxu0 0.0
  %839 = vmatpush1.msra.mxu0 0.0
  %840 = vmatprep.subr.mxu0 0.0
  %841 = vmatpush1.msra.mxu0 0.0
  %842 = vmatprep.subr.mxu0 0.0
  %843 = vmatpush1.msra.mxu0 0.0
  %844 = vmatprep.subr.mxu0 0.0
  %845 = vmatpush1.msra.mxu0 0.0
  %846 = vmatprep.subr.mxu0 0.0
  %847 = vmatpush1.msra.mxu0 0.0
  %848 = vmatprep.subr.mxu0 0.0
  %849 = vmatpush1.msra.mxu0 0.0
  %850 = vmatprep.subr.mxu0 0.0
  %851 = vmatpush1.msra.mxu0 0.0
  %852 = vmatprep.subr.mxu0 0.0
  %853 = vmatpush1.msra.mxu0 0.0
  %854 = vmatprep.subr.mxu0 0.0
  %855 = vmatpush1.msra.mxu0 0.0
  %856 = vmatprep.mubr.f32.mxu0 0.0
  %857 = vmatmul.mubr.f32.gmra.mrb[0].mxu0 %v786
  %v858 = vpop.f32.mrb[0].mxu0
  %v859 = vadd.f32 0.0, %v858
  %v860 = vpop.f32.mrb[0].mxu0
  %v861 = vadd.f32 0.0, %v860
  %862 = vdwg.mxu0
  %863 = vmatprep.subr.mxu0 %v387
  %864 = vmatpush1.msra.mxu0 %v386
  %865 = vmatprep.subr.mxu0 %v391
  %866 = vmatpush1.msra.mxu0 %v390
  %867 = vmatprep.subr.mxu0 %v395
  %868 = vmatpush1.msra.mxu0 %v394
  %869 = vmatprep.subr.mxu0 %v399
  %870 = vmatpush1.msra.mxu0 %v398
  %871 = vmatprep.subr.mxu0 %v403
  %872 = vmatpush1.msra.mxu0 %v402
  %873 = vmatprep.subr.mxu0 %v407
  %874 = vmatpush1.msra.mxu0 %v406
  %875 = vmatprep.subr.mxu0 %v411
  %876 = vmatpush1.msra.mxu0 %v410
  %877 = vmatprep.subr.mxu0 %v415
  %878 = vmatpush1.msra.mxu0 %v414
  %879 = vmatprep.subr.mxu0 %v419
  %880 = vmatpush1.msra.mxu0 %v418
  %881 = vmatprep.subr.mxu0 %v423
  %882 = vmatpush1.msra.mxu0 %v422
  %883 = vmatprep.subr.mxu0 %v427
  %884 = vmatpush1.msra.mxu0 %v426
  %885 = vmatprep.subr.mxu0 %v431
  %886 = vmatpush1.msra.mxu0 %v430
  %887 = vmatprep.subr.mxu0 %v435
  %888 = vmatpush1.msra.mxu0 %v434
  %889 = vmatprep.subr.mxu0 %v439
  %890 = vmatpush1.msra.mxu0 %v438
  %891 = vmatprep.subr.mxu0 %v443
  %892 = vmatpush1.msra.mxu0 %v442
  %893 = vmatprep.subr.mxu0 %v447
  %894 = vmatpush1.msra.mxu0 %v446
  %895 = vmatprep.subr.mxu0 0.0
  %896 = vmatpush1.msra.mxu0 0.0
  %897 = vmatprep.subr.mxu0 0.0
  %898 = vmatpush1.msra.mxu0 0.0
  %899 = vmatprep.subr.mxu0 0.0
  %900 = vmatpush1.msra.mxu0 0.0
  %901 = vmatprep.subr.mxu0 0.0
  %902 = vmatpush1.msra.mxu0 0.0
  %903 = vmatprep.subr.mxu0 0.0
  %904 = vmatpush1.msra.mxu0 0.0
  %905 = vmatprep.subr.mxu0 0.0
  %906 = vmatpush1.msra.mxu0 0.0
  %907 = vmatprep.subr.mxu0 0.0
  %908 = vmatpush1.msra.mxu0 0.0
  %909 = vmatprep.subr.mxu0 0.0
  %910 = vmatpush1.msra.mxu0 0.0
  %911 = vmatprep.subr.mxu0 0.0
  %912 = vmatpush1.msra.mxu0 0.0
  %913 = vmatprep.subr.mxu0 0.0
  %914 = vmatpush1.msra.mxu0 0.0
  %915 = vmatprep.subr.mxu0 0.0
  %916 = vmatpush1.msra.mxu0 0.0
  %917 = vmatprep.subr.mxu0 0.0
  %918 = vmatpush1.msra.mxu0 0.0
  %919 = vmatprep.subr.mxu0 0.0
  %920 = vmatpush1.msra.mxu0 0.0
  %921 = vmatprep.subr.mxu0 0.0
  %922 = vmatpush1.msra.mxu0 0.0
  %923 = vmatprep.subr.mxu0 0.0
  %924 = vmatpush1.msra.mxu0 0.0
  %925 = vmatprep.subr.mxu0 0.0
  %926 = vmatpush1.msra.mxu0 0.0
  %927 = vmatprep.mubr.f32.mxu0 0.0
  %928 = vmatmul.mubr.f32.gmra.mrb[0].mxu0 %v786
  %v929 = vpop.f32.mrb[0].mxu0
  %v930 = vadd.f32 0.0, %v929
  %v931 = vpop.f32.mrb[0].mxu0
  %v932 = vadd.f32 0.0, %v931
  %933 = vdwg.mxu0
  %v934 = vadd.f32 %v788, %v859
  %v935 = vadd.f32 %v789, %v861
  %v936 = vadd.f32 %v790, %v930
  %v937 = vadd.f32 %v791, %v932
  %v938 = vmul.f32 %v934, 0.5
  %v939 = vtanh.pop %v938
  %v940 = vmul.f32 %v939, 0.5
  %v941 = vadd.f32 %v940, 0.5
  %v942 = vmul.f32 %v935, 0.5
  %v943 = vtanh.pop %v942
  %v944 = vmul.f32 %v943, 0.5
  %v945 = vadd.f32 %v944, 0.5
  %v946 = vtanh.pop %v936
  %v947 = vmul.f32 %v937, 0.5
  %v948 = vtanh.pop %v947
  %v949 = vmul.f32 %v948, 0.5
  %v950 = vadd.f32 %v949, 0.5
  %v951 = vmul.f32 %v945, %v784
  %v952 = vmul.f32 %v941, %v946
  %v953 = vadd.f32 %v951, %v952
  %v954 = vtanh.pop %v953
  %v955 = vmul.f32 %v950, %v954
  %s956 = scalar_lea.vmem [#allocation2], 96
  %v957 = vld [vmem:[%s956] sm:$0xff]
  %v958 = vld [vmem:[%s956 + $0x8] sm:$0xff]
  %v959 = vld [vmem:[%s956 + $0x10] sm:$0xff]
  %v960 = vld [vmem:[%s956 + $0x18] sm:$0xff]
  %961 = vmatprep.subr.mxu0 %v385
  %962 = vmatpush1.msra.mxu0 %v384
  %963 = vmatprep.subr.mxu0 %v389
  %964 = vmatpush1.msra.mxu0 %v388
  %965 = vmatprep.subr.mxu0 %v393
  %966 = vmatpush1.msra.mxu0 %v392
  %967 = vmatprep.subr.mxu0 %v397
  %968 = vmatpush1.msra.mxu0 %v396
  %969 = vmatprep.subr.mxu0 %v401
  %970 = vmatpush1.msra.mxu0 %v400
  %971 = vmatprep.subr.mxu0 %v405
  %972 = vmatpush1.msra.mxu0 %v404
  %973 = vmatprep.subr.mxu0 %v409
  %974 = vmatpush1.msra.mxu0 %v408
  %975 = vmatprep.subr.mxu0 %v413
  %976 = vmatpush1.msra.mxu0 %v412
  %977 = vmatprep.subr.mxu0 %v417
  %978 = vmatpush1.msra.mxu0 %v416
  %979 = vmatprep.subr.mxu0 %v421
  %980 = vmatpush1.msra.mxu0 %v420
  %981 = vmatprep.subr.mxu0 %v425
  %982 = vmatpush1.msra.mxu0 %v424
  %983 = vmatprep.subr.mxu0 %v429
  %984 = vmatpush1.msra.mxu0 %v428
  %985 = vmatprep.subr.mxu0 %v433
  %986 = vmatpush1.msra.mxu0 %v432
  %987 = vmatprep.subr.mxu0 %v437
  %988 = vmatpush1.msra.mxu0 %v436
  %989 = vmatprep.subr.mxu0 %v441
  %990 = vmatpush1.msra.mxu0 %v440
  %991 = vmatprep.subr.mxu0 %v445
  %992 = vmatpush1.msra.mxu0 %v444
  %993 = vmatprep.subr.mxu0 0.0
  %994 = vmatpush1.msra.mxu0 0.0
  %995 = vmatprep.subr.mxu0 0.0
  %996 = vmatpush1.msra.mxu0 0.0
  %997 = vmatprep.subr.mxu0 0.0
  %998 = vmatpush1.msra.mxu0 0.0
  %999 = vmatprep.subr.mxu0 0.0
  %1000 = vmatpush1.msra.mxu0 0.0
  %1001 = vmatprep.subr.mxu0 0.0
  %1002 = vmatpush1.msra.mxu0 0.0
  %1003 = vmatprep.subr.mxu0 0.0
  %1004 = vmatpush1.msra.mxu0 0.0
  %1005 = vmatprep.subr.mxu0 0.0
  %1006 = vmatpush1.msra.mxu0 0.0
  %1007 = vmatprep.subr.mxu0 0.0
  %1008 = vmatpush1.msra.mxu0 0.0
  %1009 = vmatprep.subr.mxu0 0.0
  %1010 = vmatpush1.msra.mxu0 0.0
  %1011 = vmatprep.subr.mxu0 0.0
  %1012 = vmatpush1.msra.mxu0 0.0
  %1013 = vmatprep.subr.mxu0 0.0
  %1014 = vmatpush1.msra.mxu0 0.0
  %1015 = vmatprep.subr.mxu0 0.0
  %1016 = vmatpush1.msra.mxu0 0.0
  %1017 = vmatprep.subr.mxu0 0.0
  %1018 = vmatpush1.msra.mxu0 0.0
  %1019 = vmatprep.subr.mxu0 0.0
  %1020 = vmatpush1.msra.mxu0 0.0
  %1021 = vmatprep.subr.mxu0 0.0
  %1022 = vmatpush1.msra.mxu0 0.0
  %1023 = vmatprep.subr.mxu0 0.0
  %1024 = vmatpush1.msra.mxu0 0.0
  %1025 = vmatprep.mubr.f32.mxu0 0.0
  %1026 = vmatmul.mubr.f32.gmra.mrb[0].mxu0 %v955
  %v1027 = vpop.f32.mrb[0].mxu0
  %v1028 = vadd.f32 0.0, %v1027
  %v1029 = vpop.f32.mrb[0].mxu0
  %v1030 = vadd.f32 0.0, %v1029
  %1031 = vdwg.mxu0
  %1032 = vmatprep.subr.mxu0 %v387
  %1033 = vmatpush1.msra.mxu0 %v386
  %1034 = vmatprep.subr.mxu0 %v391
  %1035 = vmatpush1.msra.mxu0 %v390
  %1036 = vmatprep.subr.mxu0 %v395
  %1037 = vmatpush1.msra.mxu0 %v394
  %1038 = vmatprep.subr.mxu0 %v399
  %1039 = vmatpush1.msra.mxu0 %v398
  %1040 = vmatprep.subr.mxu0 %v403
  %1041 = vmatpush1.msra.mxu0 %v402
  %1042 = vmatprep.subr.mxu0 %v407
  %1043 = vmatpush1.msra.mxu0 %v406
  %1044 = vmatprep.subr.mxu0 %v411
  %1045 = vmatpush1.msra.mxu0 %v410
  %1046 = vmatprep.subr.mxu0 %v415
  %1047 = vmatpush1.msra.mxu0 %v414
  %1048 = vmatprep.subr.mxu0 %v419
  %1049 = vmatpush1.msra.mxu0 %v418
  %1050 = vmatprep.subr.mxu0 %v423
  %1051 = vmatpush1.msra.mxu0 %v422
  %1052 = vmatprep.subr.mxu0 %v427
  %1053 = vmatpush1.msra.mxu0 %v426
  %1054 = vmatprep.subr.mxu0 %v431
  %1055 = vmatpush1.msra.mxu0 %v430
  %1056 = vmatprep.subr.mxu0 %v435
  %1057 = vmatpush1.msra.mxu0 %v434
  %1058 = vmatprep.subr.mxu0 %v439
  %1059 = vmatpush1.msra.mxu0 %v438
  %1060 = vmatprep.subr.mxu0 %v443
  %1061 = vmatpush1.msra.mxu0 %v442
  %1062 = vmatprep.subr.mxu0 %v447
  %1063 = vmatpush1.msra.mxu0 %v446
  %1064 = vmatprep.subr.mxu0 0.0
  %1065 = vmatpush1.msra.mxu0 0.0
  %1066 = vmatprep.subr.mxu0 0.0
  %1067 = vmatpush1.msra.mxu0 0.0
  %1068 = vmatprep.subr.mxu0 0.0
  %1069 = vmatpush1.msra.mxu0 0.0
  %1070 = vmatprep.subr.mxu0 0.0
  %1071 = vmatpush1.msra.mxu0 0.0
  %1072 = vmatprep.subr.mxu0 0.0
  %1073 = vmatpush1.msra.mxu0 0.0
  %1074 = vmatprep.subr.mxu0 0.0
  %1075 = vmatpush1.msra.mxu0 0.0
  %1076 = vmatprep.subr.mxu0 0.0
  %1077 = vmatpush1.msra.mxu0 0.0
  %1078 = vmatprep.subr.mxu0 0.0
  %1079 = vmatpush1.msra.mxu0 0.0
  %1080 = vmatprep.subr.mxu0 0.0
  %1081 = vmatpush1.msra.mxu0 0.0
  %1082 = vmatprep.subr.mxu0 0.0
  %1083 = vmatpush1.msra.mxu0 0.0
  %1084 = vmatprep.subr.mxu0 0.0
  %1085 = vmatpush1.msra.mxu0 0.0
  %1086 = vmatprep.subr.mxu0 0.0
  %1087 = vmatpush1.msra.mxu0 0.0
  %1088 = vmatprep.subr.mxu0 0.0
  %1089 = vmatpush1.msra.mxu0 0.0
  %1090 = vmatprep.subr.mxu0 0.0
  %1091 = vmatpush1.msra.mxu0 0.0
  %1092 = vmatprep.subr.mxu0 0.0
  %1093 = vmatpush1.msra.mxu0 0.0
  %1094 = vmatprep.subr.mxu0 0.0
  %1095 = vmatpush1.msra.mxu0 0.0
  %1096 = vmatprep.mubr.f32.mxu0 0.0
  %1097 = vmatmul.mubr.f32.gmra.mrb[0].mxu0 %v955
  %v1098 = vpop.f32.mrb[0].mxu0
  %v1099 = vadd.f32 0.0, %v1098
  %v1100 = vpop.f32.mrb[0].mxu0
  %v1101 = vadd.f32 0.0, %v1100
  %1102 = vdwg.mxu0
  %v1103 = vadd.f32 %v957, %v1028
  %v1104 = vadd.f32 %v958, %v1030
  %v1105 = vadd.f32 %v959, %v1099
  %v1106 = vadd.f32 %v960, %v1101
  %v1107 = vmul.f32 %v1103, 0.5
  %v1108 = vtanh.pop %v1107
  %v1109 = vmul.f32 %v1108, 0.5
  %v1110 = vadd.f32 %v1109, 0.5
  %v1111 = vmul.f32 %v1104, 0.5
  %v1112 = vtanh.pop %v1111
  %v1113 = vmul.f32 %v1112, 0.5
  %v1114 = vadd.f32 %v1113, 0.5
  %v1115 = vtanh.pop %v1105
  %v1116 = vmul.f32 %v1106, 0.5
  %v1117 = vtanh.pop %v1116
  %v1118 = vmul.f32 %v1117, 0.5
  %v1119 = vadd.f32 %v1118, 0.5
  %v1120 = vmul.f32 %v1114, %v953
  %v1121 = vmul.f32 %v1110, %v1115
  %v1122 = vadd.f32 %v1120, %v1121
  %v1123 = vtanh.pop %v1122
  %v1124 = vmul.f32 %v1119, %v1123
  %s1125 = scalar_lea.vmem [#allocation2], 128
  %v1126 = vld [vmem:[%s1125] sm:$0xff]
  %v1127 = vld [vmem:[%s1125 + $0x8] sm:$0xff]
  %v1128 = vld [vmem:[%s1125 + $0x10] sm:$0xff]
  %v1129 = vld [vmem:[%s1125 + $0x18] sm:$0xff]
  %1130 = vmatprep.subr.mxu0 %v385
  %1131 = vmatpush1.msra.mxu0 %v384
  %1132 = vmatprep.subr.mxu0 %v389
  %1133 = vmatpush1.msra.mxu0 %v388
  %1134 = vmatprep.subr.mxu0 %v393
  %1135 = vmatpush1.msra.mxu0 %v392
  %1136 = vmatprep.subr.mxu0 %v397
  %1137 = vmatpush1.msra.mxu0 %v396
  %1138 = vmatprep.subr.mxu0 %v401
  %1139 = vmatpush1.msra.mxu0 %v400
  %1140 = vmatprep.subr.mxu0 %v405
  %1141 = vmatpush1.msra.mxu0 %v404
  %1142 = vmatprep.subr.mxu0 %v409
  %1143 = vmatpush1.msra.mxu0 %v408
  %1144 = vmatprep.subr.mxu0 %v413
  %1145 = vmatpush1.msra.mxu0 %v412
  %1146 = vmatprep.subr.mxu0 %v417
  %1147 = vmatpush1.msra.mxu0 %v416
  %1148 = vmatprep.subr.mxu0 %v421
  %1149 = vmatpush1.msra.mxu0 %v420
  %1150 = vmatprep.subr.mxu0 %v425
  %1151 = vmatpush1.msra.mxu0 %v424
  %1152 = vmatprep.subr.mxu0 %v429
  %1153 = vmatpush1.msra.mxu0 %v428
  %1154 = vmatprep.subr.mxu0 %v433
  %1155 = vmatpush1.msra.mxu0 %v432
  %1156 = vmatprep.subr.mxu0 %v437
  %1157 = vmatpush1.msra.mxu0 %v436
  %1158 = vmatprep.subr.mxu0 %v441
  %1159 = vmatpush1.msra.mxu0 %v440
  %1160 = vmatprep.subr.mxu0 %v445
  %1161 = vmatpush1.msra.mxu0 %v444
  %1162 = vmatprep.subr.mxu0 0.0
  %1163 = vmatpush1.msra.mxu0 0.0
  %1164 = vmatprep.subr.mxu0 0.0
  %1165 = vmatpush1.msra.mxu0 0.0
  %1166 = vmatprep.subr.mxu0 0.0
  %1167 = vmatpush1.msra.mxu0 0.0
  %1168 = vmatprep.subr.mxu0 0.0
  %1169 = vmatpush1.msra.mxu0 0.0
  %1170 = vmatprep.subr.mxu0 0.0
  %1171 = vmatpush1.msra.mxu0 0.0
  %1172 = vmatprep.subr.mxu0 0.0
  %1173 = vmatpush1.msra.mxu0 0.0
  %1174 = vmatprep.subr.mxu0 0.0
  %1175 = vmatpush1.msra.mxu0 0.0
  %1176 = vmatprep.subr.mxu0 0.0
  %1177 = vmatpush1.msra.mxu0 0.0
  %1178 = vmatprep.subr.mxu0 0.0
  %1179 = vmatpush1.msra.mxu0 0.0
  %1180 = vmatprep.subr.mxu0 0.0
  %1181 = vmatpush1.msra.mxu0 0.0
  %1182 = vmatprep.subr.mxu0 0.0
  %1183 = vmatpush1.msra.mxu0 0.0
  %1184 = vmatprep.subr.mxu0 0.0
  %1185 = vmatpush1.msra.mxu0 0.0
  %1186 = vmatprep.subr.mxu0 0.0
  %1187 = vmatpush1.msra.mxu0 0.0
  %1188 = vmatprep.subr.mxu0 0.0
  %1189 = vmatpush1.msra.mxu0 0.0
  %1190 = vmatprep.subr.mxu0 0.0
  %1191 = vmatpush1.msra.mxu0 0.0
  %1192 = vmatprep.subr.mxu0 0.0
  %1193 = vmatpush1.msra.mxu0 0.0
  %1194 = vmatprep.mubr.f32.mxu0 0.0
  %1195 = vmatmul.mubr.f32.gmra.mrb[0].mxu0 %v1124
  %v1196 = vpop.f32.mrb[0].mxu0
  %v1197 = vadd.f32 0.0, %v1196
  %v1198 = vpop.f32.mrb[0].mxu0
  %v1199 = vadd.f32 0.0, %v1198
  %1200 = vdwg.mxu0
  %1201 = vmatprep.subr.mxu0 %v387
  %1202 = vmatpush1.msra.mxu0 %v386
  %1203 = vmatprep.subr.mxu0 %v391
  %1204 = vmatpush1.msra.mxu0 %v390
  %1205 = vmatprep.subr.mxu0 %v395
  %1206 = vmatpush1.msra.mxu0 %v394
  %1207 = vmatprep.subr.mxu0 %v399
  %1208 = vmatpush1.msra.mxu0 %v398
  %1209 = vmatprep.subr.mxu0 %v403
  %1210 = vmatpush1.msra.mxu0 %v402
  %1211 = vmatprep.subr.mxu0 %v407
  %1212 = vmatpush1.msra.mxu0 %v406
  %1213 = vmatprep.subr.mxu0 %v411
  %1214 = vmatpush1.msra.mxu0 %v410
  %1215 = vmatprep.subr.mxu0 %v415
  %1216 = vmatpush1.msra.mxu0 %v414
  %1217 = vmatprep.subr.mxu0 %v419
  %1218 = vmatpush1.msra.mxu0 %v418
  %1219 = vmatprep.subr.mxu0 %v423
  %1220 = vmatpush1.msra.mxu0 %v422
  %1221 = vmatprep.subr.mxu0 %v427
  %1222 = vmatpush1.msra.mxu0 %v426
  %1223 = vmatprep.subr.mxu0 %v431
  %1224 = vmatpush1.msra.mxu0 %v430
  %1225 = vmatprep.subr.mxu0 %v435
  %1226 = vmatpush1.msra.mxu0 %v434
  %1227 = vmatprep.subr.mxu0 %v439
  %1228 = vmatpush1.msra.mxu0 %v438
  %1229 = vmatprep.subr.mxu0 %v443
  %1230 = vmatpush1.msra.mxu0 %v442
  %1231 = vmatprep.subr.mxu0 %v447
  %1232 = vmatpush1.msra.mxu0 %v446
  %1233 = vmatprep.subr.mxu0 0.0
  %1234 = vmatpush1.msra.mxu0 0.0
  %1235 = vmatprep.subr.mxu0 0.0
  %1236 = vmatpush1.msra.mxu0 0.0
  %1237 = vmatprep.subr.mxu0 0.0
  %1238 = vmatpush1.msra.mxu0 0.0
  %1239 = vmatprep.subr.mxu0 0.0
  %1240 = vmatpush1.msra.mxu0 0.0
  %1241 = vmatprep.subr.mxu0 0.0
  %1242 = vmatpush1.msra.mxu0 0.0
  %1243 = vmatprep.subr.mxu0 0.0
  %1244 = vmatpush1.msra.mxu0 0.0
  %1245 = vmatprep.subr.mxu0 0.0
  %1246 = vmatpush1.msra.mxu0 0.0
  %1247 = vmatprep.subr.mxu0 0.0
  %1248 = vmatpush1.msra.mxu0 0.0
  %1249 = vmatprep.subr.mxu0 0.0
  %1250 = vmatpush1.msra.mxu0 0.0
  %1251 = vmatprep.subr.mxu0 0.0
  %1252 = vmatpush1.msra.mxu0 0.0
  %1253 = vmatprep.subr.mxu0 0.0
  %1254 = vmatpush1.msra.mxu0 0.0
  %1255 = vmatprep.subr.mxu0 0.0
  %1256 = vmatpush1.msra.mxu0 0.0
  %1257 = vmatprep.subr.mxu0 0.0
  %1258 = vmatpush1.msra.mxu0 0.0
  %1259 = vmatprep.subr.mxu0 0.0
  %1260 = vmatpush1.msra.mxu0 0.0
  %1261 = vmatprep.subr.mxu0 0.0
  %1262 = vmatpush1.msra.mxu0 0.0
  %1263 = vmatprep.subr.mxu0 0.0
  %1264 = vmatpush1.msra.mxu0 0.0
  %1265 = vmatprep.mubr.f32.mxu0 0.0
  %1266 = vmatmul.mubr.f32.gmra.mrb[0].mxu0 %v1124
  %v1267 = vpop.f32.mrb[0].mxu0
  %v1268 = vadd.f32 0.0, %v1267
  %v1269 = vpop.f32.mrb[0].mxu0
  %v1270 = vadd.f32 0.0, %v1269
  %1271 = vdwg.mxu0
  %v1272 = vadd.f32 %v1126, %v1197
  %v1273 = vadd.f32 %v1127, %v1199
  %v1274 = vadd.f32 %v1128, %v1268
  %v1275 = vadd.f32 %v1129, %v1270
  %v1276 = vmul.f32 %v1272, 0.5
  %v1277 = vtanh.pop %v1276
  %v1278 = vmul.f32 %v1277, 0.5
  %v1279 = vadd.f32 %v1278, 0.5
  %v1280 = vmul.f32 %v1273, 0.5
  %v1281 = vtanh.pop %v1280
  %v1282 = vmul.f32 %v1281, 0.5
  %v1283 = vadd.f32 %v1282, 0.5
  %v1284 = vtanh.pop %v1274
  %v1285 = vmul.f32 %v1275, 0.5
  %v1286 = vtanh.pop %v1285
  %v1287 = vmul.f32 %v1286, 0.5
  %v1288 = vadd.f32 %v1287, 0.5
  %v1289 = vmul.f32 %v1283, %v1122
  %v1290 = vmul.f32 %v1279, %v1284
  %v1291 = vadd.f32 %v1289, %v1290
  %v1292 = vtanh.pop %v1291
  %v1293 = vmul.f32 %v1288, %v1292
  %s1294 = scalar_lea.vmem [#allocation2], 160
  %v1295 = vld [vmem:[%s1294] sm:$0xff]
  %v1296 = vld [vmem:[%s1294 + $0x8] sm:$0xff]
  %v1297 = vld [vmem:[%s1294 + $0x10] sm:$0xff]
  %v1298 = vld [vmem:[%s1294 + $0x18] sm:$0xff]
  %1299 = vmatprep.subr.mxu0 %v385
  %1300 = vmatpush1.msra.mxu0 %v384
  %1301 = vmatprep.subr.mxu0 %v389
  %1302 = vmatpush1.msra.mxu0 %v388
  %1303 = vmatprep.subr.mxu0 %v393
  %1304 = vmatpush1.msra.mxu0 %v392
  %1305 = vmatprep.subr.mxu0 %v397
  %1306 = vmatpush1.msra.mxu0 %v396
  %1307 = vmatprep.subr.mxu0 %v401
  %1308 = vmatpush1.msra.mxu0 %v400
  %1309 = vmatprep.subr.mxu0 %v405
  %1310 = vmatpush1.msra.mxu0 %v404
  %1311 = vmatprep.subr.mxu0 %v409
  %1312 = vmatpush1.msra.mxu0 %v408
  %1313 = vmatprep.subr.mxu0 %v413
  %1314 = vmatpush1.msra.mxu0 %v412
  %1315 = vmatprep.subr.mxu0 %v417
  %1316 = vmatpush1.msra.mxu0 %v416
  %1317 = vmatprep.subr.mxu0 %v421
  %1318 = vmatpush1.msra.mxu0 %v420
  %1319 = vmatprep.subr.mxu0 %v425
  %1320 = vmatpush1.msra.mxu0 %v424
  %1321 = vmatprep.subr.mxu0 %v429
  %1322 = vmatpush1.msra.mxu0 %v428
  %1323 = vmatprep.subr.mxu0 %v433
  %1324 = vmatpush1.msra.mxu0 %v432
  %1325 = vmatprep.subr.mxu0 %v437
  %1326 = vmatpush1.msra.mxu0 %v436
  %1327 = vmatprep.subr.mxu0 %v441
  %1328 = vmatpush1.msra.mxu0 %v440
  %1329 = vmatprep.subr.mxu0 %v445
  %1330 = vmatpush1.msra.mxu0 %v444
  %1331 = vmatprep.subr.mxu0 0.0
  %1332 = vmatpush1.msra.mxu0 0.0
  %1333 = vmatprep.subr.mxu0 0.0
  %1334 = vmatpush1.msra.mxu0 0.0
  %1335 = vmatprep.subr.mxu0 0.0
  %1336 = vmatpush1.msra.mxu0 0.0
  %1337 = vmatprep.subr.mxu0 0.0
  %1338 = vmatpush1.msra.mxu0 0.0
  %1339 = vmatprep.subr.mxu0 0.0
  %1340 = vmatpush1.msra.mxu0 0.0
  %1341 = vmatprep.subr.mxu0 0.0
  %1342 = vmatpush1.msra.mxu0 0.0
  %1343 = vmatprep.subr.mxu0 0.0
  %1344 = vmatpush1.msra.mxu0 0.0
  %1345 = vmatprep.subr.mxu0 0.0
  %1346 = vmatpush1.msra.mxu0 0.0
  %1347 = vmatprep.subr.mxu0 0.0
  %1348 = vmatpush1.msra.mxu0 0.0
  %1349 = vmatprep.subr.mxu0 0.0
  %1350 = vmatpush1.msra.mxu0 0.0
  %1351 = vmatprep.subr.mxu0 0.0
  %1352 = vmatpush1.msra.mxu0 0.0
  %1353 = vmatprep.subr.mxu0 0.0
  %1354 = vmatpush1.msra.mxu0 0.0
  %1355 = vmatprep.subr.mxu0 0.0
  %1356 = vmatpush1.msra.mxu0 0.0
  %1357 = vmatprep.subr.mxu0 0.0
  %1358 = vmatpush1.msra.mxu0 0.0
  %1359 = vmatprep.subr.mxu0 0.0
  %1360 = vmatpush1.msra.mxu0 0.0
  %1361 = vmatprep.subr.mxu0 0.0
  %1362 = vmatpush1.msra.mxu0 0.0
  %1363 = vmatprep.mubr.f32.mxu0 0.0
  %1364 = vmatmul.mubr.f32.gmra.mrb[0].mxu0 %v1293
  %v1365 = vpop.f32.mrb[0].mxu0
  %v1366 = vadd.f32 0.0, %v1365
  %v1367 = vpop.f32.mrb[0].mxu0
  %v1368 = vadd.f32 0.0, %v1367
  %1369 = vdwg.mxu0
  %1370 = vmatprep.subr.mxu0 %v387
  %1371 = vmatpush1.msra.mxu0 %v386
  %1372 = vmatprep.subr.mxu0 %v391
  %1373 = vmatpush1.msra.mxu0 %v390
  %1374 = vmatprep.subr.mxu0 %v395
  %1375 = vmatpush1.msra.mxu0 %v394
  %1376 = vmatprep.subr.mxu0 %v399
  %1377 = vmatpush1.msra.mxu0 %v398
  %1378 = vmatprep.subr.mxu0 %v403
  %1379 = vmatpush1.msra.mxu0 %v402
  %1380 = vmatprep.subr.mxu0 %v407
  %1381 = vmatpush1.msra.mxu0 %v406
  %1382 = vmatprep.subr.mxu0 %v411
  %1383 = vmatpush1.msra.mxu0 %v410
  %1384 = vmatprep.subr.mxu0 %v415
  %1385 = vmatpush1.msra.mxu0 %v414
  %1386 = vmatprep.subr.mxu0 %v419
  %1387 = vmatpush1.msra.mxu0 %v418
  %1388 = vmatprep.subr.mxu0 %v423
  %1389 = vmatpush1.msra.mxu0 %v422
  %1390 = vmatprep.subr.mxu0 %v427
  %1391 = vmatpush1.msra.mxu0 %v426
  %1392 = vmatprep.subr.mxu0 %v431
  %1393 = vmatpush1.msra.mxu0 %v430
  %1394 = vmatprep.subr.mxu0 %v435
  %1395 = vmatpush1.msra.mxu0 %v434
  %1396 = vmatprep.subr.mxu0 %v439
  %1397 = vmatpush1.msra.mxu0 %v438
  %1398 = vmatprep.subr.mxu0 %v443
  %1399 = vmatpush1.msra.mxu0 %v442
  %1400 = vmatprep.subr.mxu0 %v447
  %1401 = vmatpush1.msra.mxu0 %v446
  %1402 = vmatprep.subr.mxu0 0.0
  %1403 = vmatpush1.msra.mxu0 0.0
  %1404 = vmatprep.subr.mxu0 0.0
  %1405 = vmatpush1.msra.mxu0 0.0
  %1406 = vmatprep.subr.mxu0 0.0
  %1407 = vmatpush1.msra.mxu0 0.0
  %1408 = vmatprep.subr.mxu0 0.0
  %1409 = vmatpush1.msra.mxu0 0.0
  %1410 = vmatprep.subr.mxu0 0.0
  %1411 = vmatpush1.msra.mxu0 0.0
  %1412 = vmatprep.subr.mxu0 0.0
  %1413 = vmatpush1.msra.mxu0 0.0
  %1414 = vmatprep.subr.mxu0 0.0
  %1415 = vmatpush1.msra.mxu0 0.0
  %1416 = vmatprep.subr.mxu0 0.0
  %1417 = vmatpush1.msra.mxu0 0.0
  %1418 = vmatprep.subr.mxu0 0.0
  %1419 = vmatpush1.msra.mxu0 0.0
  %1420 = vmatprep.subr.mxu0 0.0
  %1421 = vmatpush1.msra.mxu0 0.0
  %1422 = vmatprep.subr.mxu0 0.0
  %1423 = vmatpush1.msra.mxu0 0.0
  %1424 = vmatprep.subr.mxu0 0.0
  %1425 = vmatpush1.msra.mxu0 0.0
  %1426 = vmatprep.subr.mxu0 0.0
  %1427 = vmatpush1.msra.mxu0 0.0
  %1428 = vmatprep.subr.mxu0 0.0
  %1429 = vmatpush1.msra.mxu0 0.0
  %1430 = vmatprep.subr.mxu0 0.0
  %1431 = vmatpush1.msra.mxu0 0.0
  %1432 = vmatprep.subr.mxu0 0.0
  %1433 = vmatpush1.msra.mxu0 0.0
  %1434 = vmatprep.mubr.f32.mxu0 0.0
  %1435 = vmatmul.mubr.f32.gmra.mrb[0].mxu0 %v1293
  %v1436 = vpop.f32.mrb[0].mxu0
  %v1437 = vadd.f32 0.0, %v1436
  %v1438 = vpop.f32.mrb[0].mxu0
  %v1439 = vadd.f32 0.0, %v1438
  %1440 = vdwg.mxu0
  %v1441 = vadd.f32 %v1295, %v1366
  %v1442 = vadd.f32 %v1296, %v1368
  %v1443 = vadd.f32 %v1297, %v1437
  %v1444 = vadd.f32 %v1298, %v1439
  %v1445 = vmul.f32 %v1441, 0.5
  %v1446 = vtanh.pop %v1445
  %v1447 = vmul.f32 %v1446, 0.5
  %v1448 = vadd.f32 %v1447, 0.5
  %v1449 = vmul.f32 %v1442, 0.5
  %v1450 = vtanh.pop %v1449
  %v1451 = vmul.f32 %v1450, 0.5
  %v1452 = vadd.f32 %v1451, 0.5
  %v1453 = vtanh.pop %v1443
  %v1454 = vmul.f32 %v1444, 0.5
  %v1455 = vtanh.pop %v1454
  %v1456 = vmul.f32 %v1455, 0.5
  %v1457 = vadd.f32 %v1456, 0.5
  %v1458 = vmul.f32 %v1452, %v1291
  %v1459 = vmul.f32 %v1448, %v1453
  %v1460 = vadd.f32 %v1458, %v1459
  %v1461 = vtanh.pop %v1460
  %v1462 = vmul.f32 %v1457, %v1461
  %s1463 = scalar_lea.vmem [#allocation2], 192
  %v1464 = vld [vmem:[%s1463] sm:$0xff]
  %v1465 = vld [vmem:[%s1463 + $0x8] sm:$0xff]
  %v1466 = vld [vmem:[%s1463 + $0x10] sm:$0xff]
  %v1467 = vld [vmem:[%s1463 + $0x18] sm:$0xff]
  %1468 = vmatprep.subr.mxu0 %v385
  %1469 = vmatpush1.msra.mxu0 %v384
  %1470 = vmatprep.subr.mxu0 %v389
  %1471 = vmatpush1.msra.mxu0 %v388
  %1472 = vmatprep.subr.mxu0 %v393
  %1473 = vmatpush1.msra.mxu0 %v392
  %1474 = vmatprep.subr.mxu0 %v397
  %1475 = vmatpush1.msra.mxu0 %v396
  %1476 = vmatprep.subr.mxu0 %v401
  %1477 = vmatpush1.msra.mxu0 %v400
  %1478 = vmatprep.subr.mxu0 %v405
  %1479 = vmatpush1.msra.mxu0 %v404
  %1480 = vmatprep.subr.mxu0 %v409
  %1481 = vmatpush1.msra.mxu0 %v408
  %1482 = vmatprep.subr.mxu0 %v413
  %1483 = vmatpush1.msra.mxu0 %v412
  %1484 = vmatprep.subr.mxu0 %v417
  %1485 = vmatpush1.msra.mxu0 %v416
  %1486 = vmatprep.subr.mxu0 %v421
  %1487 = vmatpush1.msra.mxu0 %v420
  %1488 = vmatprep.subr.mxu0 %v425
  %1489 = vmatpush1.msra.mxu0 %v424
  %1490 = vmatprep.subr.mxu0 %v429
  %1491 = vmatpush1.msra.mxu0 %v428
  %1492 = vmatprep.subr.mxu0 %v433
  %1493 = vmatpush1.msra.mxu0 %v432
  %1494 = vmatprep.subr.mxu0 %v437
  %1495 = vmatpush1.msra.mxu0 %v436
  %1496 = vmatprep.subr.mxu0 %v441
  %1497 = vmatpush1.msra.mxu0 %v440
  %1498 = vmatprep.subr.mxu0 %v445
  %1499 = vmatpush1.msra.mxu0 %v444
  %1500 = vmatprep.subr.mxu0 0.0
  %1501 = vmatpush1.msra.mxu0 0.0
  %1502 = vmatprep.subr.mxu0 0.0
  %1503 = vmatpush1.msra.mxu0 0.0
  %1504 = vmatprep.subr.mxu0 0.0
  %1505 = vmatpush1.msra.mxu0 0.0
  %1506 = vmatprep.subr.mxu0 0.0
  %1507 = vmatpush1.msra.mxu0 0.0
  %1508 = vmatprep.subr.mxu0 0.0
  %1509 = vmatpush1.msra.mxu0 0.0
  %1510 = vmatprep.subr.mxu0 0.0
  %1511 = vmatpush1.msra.mxu0 0.0
  %1512 = vmatprep.subr.mxu0 0.0
  %1513 = vmatpush1.msra.mxu0 0.0
  %1514 = vmatprep.subr.mxu0 0.0
  %1515 = vmatpush1.msra.mxu0 0.0
  %1516 = vmatprep.subr.mxu0 0.0
  %1517 = vmatpush1.msra.mxu0 0.0
  %1518 = vmatprep.subr.mxu0 0.0
  %1519 = vmatpush1.msra.mxu0 0.0
  %1520 = vmatprep.subr.mxu0 0.0
  %1521 = vmatpush1.msra.mxu0 0.0
  %1522 = vmatprep.subr.mxu0 0.0
  %1523 = vmatpush1.msra.mxu0 0.0
  %1524 = vmatprep.subr.mxu0 0.0
  %1525 = vmatpush1.msra.mxu0 0.0
  %1526 = vmatprep.subr.mxu0 0.0
  %1527 = vmatpush1.msra.mxu0 0.0
  %1528 = vmatprep.subr.mxu0 0.0
  %1529 = vmatpush1.msra.mxu0 0.0
  %1530 = vmatprep.subr.mxu0 0.0
  %1531 = vmatpush1.msra.mxu0 0.0
  %1532 = vmatprep.mubr.f32.mxu0 0.0
  %1533 = vmatmul.mubr.f32.gmra.mrb[0].mxu0 %v1462
  %v1534 = vpop.f32.mrb[0].mxu0
  %v1535 = vadd.f32 0.0, %v1534
  %v1536 = vpop.f32.mrb[0].mxu0
  %v1537 = vadd.f32 0.0, %v1536
  %1538 = vdwg.mxu0
  %1539 = vmatprep.subr.mxu0 %v387
  %1540 = vmatpush1.msra.mxu0 %v386
  %1541 = vmatprep.subr.mxu0 %v391
  %1542 = vmatpush1.msra.mxu0 %v390
  %1543 = vmatprep.subr.mxu0 %v395
  %1544 = vmatpush1.msra.mxu0 %v394
  %1545 = vmatprep.subr.mxu0 %v399
  %1546 = vmatpush1.msra.mxu0 %v398
  %1547 = vmatprep.subr.mxu0 %v403
  %1548 = vmatpush1.msra.mxu0 %v402
  %1549 = vmatprep.subr.mxu0 %v407
  %1550 = vmatpush1.msra.mxu0 %v406
  %1551 = vmatprep.subr.mxu0 %v411
  %1552 = vmatpush1.msra.mxu0 %v410
  %1553 = vmatprep.subr.mxu0 %v415
  %1554 = vmatpush1.msra.mxu0 %v414
  %1555 = vmatprep.subr.mxu0 %v419
  %1556 = vmatpush1.msra.mxu0 %v418
  %1557 = vmatprep.subr.mxu0 %v423
  %1558 = vmatpush1.msra.mxu0 %v422
  %1559 = vmatprep.subr.mxu0 %v427
  %1560 = vmatpush1.msra.mxu0 %v426
  %1561 = vmatprep.subr.mxu0 %v431
  %1562 = vmatpush1.msra.mxu0 %v430
  %1563 = vmatprep.subr.mxu0 %v435
  %1564 = vmatpush1.msra.mxu0 %v434
  %1565 = vmatprep.subr.mxu0 %v439
  %1566 = vmatpush1.msra.mxu0 %v438
  %1567 = vmatprep.subr.mxu0 %v443
  %1568 = vmatpush1.msra.mxu0 %v442
  %1569 = vmatprep.subr.mxu0 %v447
  %1570 = vmatpush1.msra.mxu0 %v446
  %1571 = vmatprep.subr.mxu0 0.0
  %1572 = vmatpush1.msra.mxu0 0.0
  %1573 = vmatprep.subr.mxu0 0.0
  %1574 = vmatpush1.msra.mxu0 0.0
  %1575 = vmatprep.subr.mxu0 0.0
  %1576 = vmatpush1.msra.mxu0 0.0
  %1577 = vmatprep.subr.mxu0 0.0
  %1578 = vmatpush1.msra.mxu0 0.0
  %1579 = vmatprep.subr.mxu0 0.0
  %1580 = vmatpush1.msra.mxu0 0.0
  %1581 = vmatprep.subr.mxu0 0.0
  %1582 = vmatpush1.msra.mxu0 0.0
  %1583 = vmatprep.subr.mxu0 0.0
  %1584 = vmatpush1.msra.mxu0 0.0
  %1585 = vmatprep.subr.mxu0 0.0
  %1586 = vmatpush1.msra.mxu0 0.0
  %1587 = vmatprep.subr.mxu0 0.0
  %1588 = vmatpush1.msra.mxu0 0.0
  %1589 = vmatprep.subr.mxu0 0.0
  %1590 = vmatpush1.msra.mxu0 0.0
  %1591 = vmatprep.subr.mxu0 0.0
  %1592 = vmatpush1.msra.mxu0 0.0
  %1593 = vmatprep.subr.mxu0 0.0
  %1594 = vmatpush1.msra.mxu0 0.0
  %1595 = vmatprep.subr.mxu0 0.0
  %1596 = vmatpush1.msra.mxu0 0.0
  %1597 = vmatprep.subr.mxu0 0.0
  %1598 = vmatpush1.msra.mxu0 0.0
  %1599 = vmatprep.subr.mxu0 0.0
  %1600 = vmatpush1.msra.mxu0 0.0
  %1601 = vmatprep.subr.mxu0 0.0
  %1602 = vmatpush1.msra.mxu0 0.0
  %1603 = vmatprep.mubr.f32.mxu0 0.0
  %1604 = vmatmul.mubr.f32.gmra.mrb[0].mxu0 %v1462
  %v1605 = vpop.f32.mrb[0].mxu0
  %v1606 = vadd.f32 0.0, %v1605
  %v1607 = vpop.f32.mrb[0].mxu0
  %v1608 = vadd.f32 0.0, %v1607
  %1609 = vdwg.mxu0
  %v1610 = vadd.f32 %v1464, %v1535
  %v1611 = vadd.f32 %v1465, %v1537
  %v1612 = vadd.f32 %v1466, %v1606
  %v1613 = vadd.f32 %v1467, %v1608
  %v1614 = vmul.f32 %v1610, 0.5
  %v1615 = vtanh.pop %v1614
  %v1616 = vmul.f32 %v1615, 0.5
  %v1617 = vadd.f32 %v1616, 0.5
  %v1618 = vmul.f32 %v1611, 0.5
  %v1619 = vtanh.pop %v1618
  %v1620 = vmul.f32 %v1619, 0.5
  %v1621 = vadd.f32 %v1620, 0.5
  %v1622 = vtanh.pop %v1612
  %v1623 = vmul.f32 %v1613, 0.5
  %v1624 = vtanh.pop %v1623
  %v1625 = vmul.f32 %v1624, 0.5
  %v1626 = vadd.f32 %v1625, 0.5
  %v1627 = vmul.f32 %v1621, %v1460
  %v1628 = vmul.f32 %v1617, %v1622
  %v1629 = vadd.f32 %v1627, %v1628
  %v1630 = vtanh.pop %v1629
  %v1631 = vmul.f32 %v1626, %v1630
  %s1632 = scalar_lea.vmem [#allocation2], 224
  %v1633 = vld [vmem:[%s1632] sm:$0xff]
  %v1634 = vld [vmem:[%s1632 + $0x8] sm:$0xff]
  %v1635 = vld [vmem:[%s1632 + $0x10] sm:$0xff]
  %v1636 = vld [vmem:[%s1632 + $0x18] sm:$0xff]
  %1637 = vmatprep.subr.mxu0 %v385
  %1638 = vmatpush1.msra.mxu0 %v384
  %1639 = vmatprep.subr.mxu0 %v389
  %1640 = vmatpush1.msra.mxu0 %v388
  %1641 = vmatprep.subr.mxu0 %v393
  %1642 = vmatpush1.msra.mxu0 %v392
  %1643 = vmatprep.subr.mxu0 %v397
  %1644 = vmatpush1.msra.mxu0 %v396
  %1645 = vmatprep.subr.mxu0 %v401
  %1646 = vmatpush1.msra.mxu0 %v400
  %1647 = vmatprep.subr.mxu0 %v405
  %1648 = vmatpush1.msra.mxu0 %v404
  %1649 = vmatprep.subr.mxu0 %v409
  %1650 = vmatpush1.msra.mxu0 %v408
  %1651 = vmatprep.subr.mxu0 %v413
  %1652 = vmatpush1.msra.mxu0 %v412
  %1653 = vmatprep.subr.mxu0 %v417
  %1654 = vmatpush1.msra.mxu0 %v416
  %1655 = vmatprep.subr.mxu0 %v421
  %1656 = vmatpush1.msra.mxu0 %v420
  %1657 = vmatprep.subr.mxu0 %v425
  %1658 = vmatpush1.msra.mxu0 %v424
  %1659 = vmatprep.subr.mxu0 %v429
  %1660 = vmatpush1.msra.mxu0 %v428
  %1661 = vmatprep.subr.mxu0 %v433
  %1662 = vmatpush1.msra.mxu0 %v432
  %1663 = vmatprep.subr.mxu0 %v437
  %1664 = vmatpush1.msra.mxu0 %v436
  %1665 = vmatprep.subr.mxu0 %v441
  %1666 = vmatpush1.msra.mxu0 %v440
  %1667 = vmatprep.subr.mxu0 %v445
  %1668 = vmatpush1.msra.mxu0 %v444
  %1669 = vmatprep.subr.mxu0 0.0
  %1670 = vmatpush1.msra.mxu0 0.0
  %1671 = vmatprep.subr.mxu0 0.0
  %1672 = vmatpush1.msra.mxu0 0.0
  %1673 = vmatprep.subr.mxu0 0.0
  %1674 = vmatpush1.msra.mxu0 0.0
  %1675 = vmatprep.subr.mxu0 0.0
  %1676 = vmatpush1.msra.mxu0 0.0
  %1677 = vmatprep.subr.mxu0 0.0
  %1678 = vmatpush1.msra.mxu0 0.0
  %1679 = vmatprep.subr.mxu0 0.0
  %1680 = vmatpush1.msra.mxu0 0.0
  %1681 = vmatprep.subr.mxu0 0.0
  %1682 = vmatpush1.msra.mxu0 0.0
  %1683 = vmatprep.subr.mxu0 0.0
  %1684 = vmatpush1.msra.mxu0 0.0
  %1685 = vmatprep.subr.mxu0 0.0
  %1686 = vmatpush1.msra.mxu0 0.0
  %1687 = vmatprep.subr.mxu0 0.0
  %1688 = vmatpush1.msra.mxu0 0.0
  %1689 = vmatprep.subr.mxu0 0.0
  %1690 = vmatpush1.msra.mxu0 0.0
  %1691 = vmatprep.subr.mxu0 0.0
  %1692 = vmatpush1.msra.mxu0 0.0
  %1693 = vmatprep.subr.mxu0 0.0
  %1694 = vmatpush1.msra.mxu0 0.0
  %1695 = vmatprep.subr.mxu0 0.0
  %1696 = vmatpush1.msra.mxu0 0.0
  %1697 = vmatprep.subr.mxu0 0.0
  %1698 = vmatpush1.msra.mxu0 0.0
  %1699 = vmatprep.subr.mxu0 0.0
  %1700 = vmatpush1.msra.mxu0 0.0
  %1701 = vmatprep.mubr.f32.mxu0 0.0
  %1702 = vmatmul.mubr.f32.gmra.mrb[0].mxu0 %v1631
  %v1703 = vpop.f32.mrb[0].mxu0
  %v1704 = vadd.f32 0.0, %v1703
  %v1705 = vpop.f32.mrb[0].mxu0
  %v1706 = vadd.f32 0.0, %v1705
  %1707 = vdwg.mxu0
  %1708 = vmatprep.subr.mxu0 %v387
  %1709 = vmatpush1.msra.mxu0 %v386
  %1710 = vmatprep.subr.mxu0 %v391
  %1711 = vmatpush1.msra.mxu0 %v390
  %1712 = vmatprep.subr.mxu0 %v395
  %1713 = vmatpush1.msra.mxu0 %v394
  %1714 = vmatprep.subr.mxu0 %v399
  %1715 = vmatpush1.msra.mxu0 %v398
  %1716 = vmatprep.subr.mxu0 %v403
  %1717 = vmatpush1.msra.mxu0 %v402
  %1718 = vmatprep.subr.mxu0 %v407
  %1719 = vmatpush1.msra.mxu0 %v406
  %1720 = vmatprep.subr.mxu0 %v411
  %1721 = vmatpush1.msra.mxu0 %v410
  %1722 = vmatprep.subr.mxu0 %v415
  %1723 = vmatpush1.msra.mxu0 %v414
  %1724 = vmatprep.subr.mxu0 %v419
  %1725 = vmatpush1.msra.mxu0 %v418
  %1726 = vmatprep.subr.mxu0 %v423
  %1727 = vmatpush1.msra.mxu0 %v422
  %1728 = vmatprep.subr.mxu0 %v427
  %1729 = vmatpush1.msra.mxu0 %v426
  %1730 = vmatprep.subr.mxu0 %v431
  %1731 = vmatpush1.msra.mxu0 %v430
  %1732 = vmatprep.subr.mxu0 %v435
  %1733 = vmatpush1.msra.mxu0 %v434
  %1734 = vmatprep.subr.mxu0 %v439
  %1735 = vmatpush1.msra.mxu0 %v438
  %1736 = vmatprep.subr.mxu0 %v443
  %1737 = vmatpush1.msra.mxu0 %v442
  %1738 = vmatprep.subr.mxu0 %v447
  %1739 = vmatpush1.msra.mxu0 %v446
  %1740 = vmatprep.subr.mxu0 0.0
  %1741 = vmatpush1.msra.mxu0 0.0
  %1742 = vmatprep.subr.mxu0 0.0
  %1743 = vmatpush1.msra.mxu0 0.0
  %1744 = vmatprep.subr.mxu0 0.0
  %1745 = vmatpush1.msra.mxu0 0.0
  %1746 = vmatprep.subr.mxu0 0.0
  %1747 = vmatpush1.msra.mxu0 0.0
  %1748 = vmatprep.subr.mxu0 0.0
  %1749 = vmatpush1.msra.mxu0 0.0
  %1750 = vmatprep.subr.mxu0 0.0
  %1751 = vmatpush1.msra.mxu0 0.0
  %1752 = vmatprep.subr.mxu0 0.0
  %1753 = vmatpush1.msra.mxu0 0.0
  %1754 = vmatprep.subr.mxu0 0.0
  %1755 = vmatpush1.msra.mxu0 0.0
  %1756 = vmatprep.subr.mxu0 0.0
  %1757 = vmatpush1.msra.mxu0 0.0
  %1758 = vmatprep.subr.mxu0 0.0
  %1759 = vmatpush1.msra.mxu0 0.0
  %1760 = vmatprep.subr.mxu0 0.0
  %1761 = vmatpush1.msra.mxu0 0.0
  %1762 = vmatprep.subr.mxu0 0.0
  %1763 = vmatpush1.msra.mxu0 0.0
  %1764 = vmatprep.subr.mxu0 0.0
  %1765 = vmatpush1.msra.mxu0 0.0
  %1766 = vmatprep.subr.mxu0 0.0
  %1767 = vmatpush1.msra.mxu0 0.0
  %1768 = vmatprep.subr.mxu0 0.0
  %1769 = vmatpush1.msra.mxu0 0.0
  %1770 = vmatprep.subr.mxu0 0.0
  %1771 = vmatpush1.msra.mxu0 0.0
  %1772 = vmatprep.mubr.f32.mxu0 0.0
  %1773 = vmatmul.mubr.f32.gmra.mrb[0].mxu0 %v1631
  %v1774 = vpop.f32.mrb[0].mxu0
  %v1775 = vadd.f32 0.0, %v1774
  %v1776 = vpop.f32.mrb[0].mxu0
  %v1777 = vadd.f32 0.0, %v1776
  %1778 = vdwg.mxu0
  %v1779 = vadd.f32 %v1633, %v1704
  %v1780 = vadd.f32 %v1634, %v1706
  %v1781 = vadd.f32 %v1635, %v1775
  %v1782 = vadd.f32 %v1636, %v1777
  %v1783 = vmul.f32 %v1779, 0.5
  %v1784 = vtanh.pop %v1783
  %v1785 = vmul.f32 %v1784, 0.5
  %v1786 = vadd.f32 %v1785, 0.5
  %v1787 = vmul.f32 %v1780, 0.5
  %v1788 = vtanh.pop %v1787
  %v1789 = vmul.f32 %v1788, 0.5
  %v1790 = vadd.f32 %v1789, 0.5
  %v1791 = vtanh.pop %v1781
  %v1792 = vmul.f32 %v1782, 0.5
  %v1793 = vtanh.pop %v1792
  %v1794 = vmul.f32 %v1793, 0.5
  %v1795 = vadd.f32 %v1794, 0.5
  %v1796 = vmul.f32 %v1790, %v1629
  %v1797 = vmul.f32 %v1786, %v1791
  %v1798 = vadd.f32 %v1796, %v1797
  %v1799 = vtanh.pop %v1798
  %v1800 = vmul.f32 %v1795, %v1799
  %v1801 = vld [vmem:[%s4] sm:$0xff]
  %v1802 = vld [vmem:[%s4 + $0x8] sm:$0xff]
  %v1803 = vld [vmem:[%s4 + $0x10] sm:$0xff]
  %v1804 = vld [vmem:[%s4 + $0x18] sm:$0xff]
  %v1805 = vld [vmem:[%s4 + $0x20] sm:$0xff]
  %v1806 = vld [vmem:[%s4 + $0x28] sm:$0xff]
  %v1807 = vld [vmem:[%s4 + $0x30] sm:$0xff]
  %v1808 = vld [vmem:[%s4 + $0x38] sm:$0xff]
  %v1809 = vld [vmem:[%s4 + $0x40] sm:$0xff]
  %v1810 = vld [vmem:[%s4 + $0x48] sm:$0xff]
  %v1811 = vld [vmem:[%s4 + $0x50] sm:$0xff]
  %v1812 = vld [vmem:[%s4 + $0x58] sm:$0xff]
  %v1813 = vld [vmem:[%s4 + $0x60] sm:$0xff]
  %v1814 = vld [vmem:[%s4 + $0x68] sm:$0xff]
  %v1815 = vld [vmem:[%s4 + $0x70] sm:$0xff]
  %v1816 = vld [vmem:[%s4 + $0x78] sm:$0xff]
  %v1817 = vld [vmem:[%s4 + $0x80] sm:$0xff]
  %v1818 = vld [vmem:[%s4 + $0x88] sm:$0xff]
  %v1819 = vld [vmem:[%s4 + $0x90] sm:$0xff]
  %v1820 = vld [vmem:[%s4 + $0x98] sm:$0xff]
  %v1821 = vld [vmem:[%s4 + $0xa0] sm:$0xff]
  %v1822 = vld [vmem:[%s4 + $0xa8] sm:$0xff]
  %v1823 = vld [vmem:[%s4 + $0xb0] sm:$0xff]
  %v1824 = vld [vmem:[%s4 + $0xb8] sm:$0xff]
  %v1825 = vld [vmem:[%s4 + $0xc0] sm:$0xff]
  %v1826 = vld [vmem:[%s4 + $0xc8] sm:$0xff]
  %v1827 = vld [vmem:[%s4 + $0xd0] sm:$0xff]
  %v1828 = vld [vmem:[%s4 + $0xd8] sm:$0xff]
  %v1829 = vld [vmem:[%s4 + $0xe0] sm:$0xff]
  %v1830 = vld [vmem:[%s4 + $0xe8] sm:$0xff]
  %v1831 = vld [vmem:[%s4 + $0xf0] sm:$0xff]
  %v1832 = vld [vmem:[%s4 + $0xf8] sm:$0xff]
  %v1833 = vld [vmem:[%s5] sm:$0x3]
  %v1835 = vlaneseq
  %v1836 = vshrl.u32 %v1835, 7
  %v1837 = vsub.s32 0, %v1836
  %v1838 = vrot.slane %v1833, %v1837
  %v1839 = vlaneseq
  %v1840 = vshrl.u32 %v1839, 7
  %v1841 = vsub.s32 1, %v1840
  %v1842 = vrot.slane %v1833, %v1841
  %1845 = vmatprep.subr.mxu0 %v1802
  %1846 = vmatpush1.msra.mxu0 %v1801
  %1847 = vmatprep.subr.mxu0 %v1804
  %1848 = vmatpush1.msra.mxu0 %v1803
  %1849 = vmatprep.subr.mxu0 %v1806
  %1850 = vmatpush1.msra.mxu0 %v1805
  %1851 = vmatprep.subr.mxu0 %v1808
  %1852 = vmatpush1.msra.mxu0 %v1807
  %1853 = vmatprep.subr.mxu0 %v1810
  %1854 = vmatpush1.msra.mxu0 %v1809
  %1855 = vmatprep.subr.mxu0 %v1812
  %1856 = vmatpush1.msra.mxu0 %v1811
  %1857 = vmatprep.subr.mxu0 %v1814
  %1858 = vmatpush1.msra.mxu0 %v1813
  %1859 = vmatprep.subr.mxu0 %v1816
  %1860 = vmatpush1.msra.mxu0 %v1815
  %1861 = vmatprep.subr.mxu0 %v1818
  %1862 = vmatpush1.msra.mxu0 %v1817
  %1863 = vmatprep.subr.mxu0 %v1820
  %1864 = vmatpush1.msra.mxu0 %v1819
  %1865 = vmatprep.subr.mxu0 %v1822
  %1866 = vmatpush1.msra.mxu0 %v1821
  %1867 = vmatprep.subr.mxu0 %v1824
  %1868 = vmatpush1.msra.mxu0 %v1823
  %1869 = vmatprep.subr.mxu0 %v1826
  %1870 = vmatpush1.msra.mxu0 %v1825
  %1871 = vmatprep.subr.mxu0 %v1828
  %1872 = vmatpush1.msra.mxu0 %v1827
  %1873 = vmatprep.subr.mxu0 %v1830
  %1874 = vmatpush1.msra.mxu0 %v1829
  %1875 = vmatprep.subr.mxu0 %v1832
  %1876 = vmatpush1.msra.mxu0 %v1831
  %1877 = vmatprep.subr.mxu0 0.0
  %1878 = vmatpush1.msra.mxu0 0.0
  %1879 = vmatprep.subr.mxu0 0.0
  %1880 = vmatpush1.msra.mxu0 0.0
  %1881 = vmatprep.subr.mxu0 0.0
  %1882 = vmatpush1.msra.mxu0 0.0
  %1883 = vmatprep.subr.mxu0 0.0
  %1884 = vmatpush1.msra.mxu0 0.0
  %1885 = vmatprep.subr.mxu0 0.0
  %1886 = vmatpush1.msra.mxu0 0.0
  %1887 = vmatprep.subr.mxu0 0.0
  %1888 = vmatpush1.msra.mxu0 0.0
  %1889 = vmatprep.subr.mxu0 0.0
  %1890 = vmatpush1.msra.mxu0 0.0
  %1891 = vmatprep.subr.mxu0 0.0
  %1892 = vmatpush1.msra.mxu0 0.0
  %1893 = vmatprep.subr.mxu0 0.0
  %1894 = vmatpush1.msra.mxu0 0.0
  %1895 = vmatprep.subr.mxu0 0.0
  %1896 = vmatpush1.msra.mxu0 0.0
  %1897 = vmatprep.subr.mxu0 0.0
  %1898 = vmatpush1.msra.mxu0 0.0
  %1899 = vmatprep.subr.mxu0 0.0
  %1900 = vmatpush1.msra.mxu0 0.0
  %1901 = vmatprep.subr.mxu0 0.0
  %1902 = vmatpush1.msra.mxu0 0.0
  %1903 = vmatprep.subr.mxu0 0.0
  %1904 = vmatpush1.msra.mxu0 0.0
  %1905 = vmatprep.subr.mxu0 0.0
  %1906 = vmatpush1.msra.mxu0 0.0
  %1907 = vmatprep.subr.mxu0 0.0
  %1908 = vmatpush1.msra.mxu0 0.0
  %1909 = vmatprep.mubr.f32.mxu0 0.0
  %1910 = vmatmul.mubr.f32.gmra.mrb[0].mxu0 %v1800
  %v1911 = vpop.f32.mrb[0].mxu0
  %v1912 = vadd.f32 %v1838, %v1911
  %v1913 = vpop.f32.mrb[0].mxu0
  %v1914 = vadd.f32 %v1842, %v1913
  %1915 = vdwg.mxu0
  %1916 = vmax.xlane.f32.xlu0 %v1912
  %v1917 = vpop.xlane.xlu0 %1916
  %v1918 = vsub.f32 %v1912, %v1917
  %v1919 = vmul.f32 %v1918, 1.442695
  %v1920 = vpow.pop %v1919
  %1921 = vadd.xlane.f32.xlu0 %v1920
  %v1922 = vpop.xlane.xlu0 %1921
  %v1923 = vrcp.pop %v1922
  %v1924 = vmul.f32 %v1920, %v1923
  %1925 = vst [vmem:[%s8] sm:$0xff] %v1924
  %1926 = vst [vmem:[%s8 + $0x8] sm:$0xff] %v1914
  %1927 = vst [vmem:[%s9] sm:$0xff] %v1800
  %1928 = vst [vmem:[%s10] sm:$0xff] %v1798
  // Predicated region
  $region34: #{actor_critic_rnn_forward.1} parent=0 // pred_check
    _
  $region35: #{actor_critic_rnn_forward.1} parent=0 // pred_check_branch
    %1930 = sbr.rel (0) target = $region37
  $region36: #{actor_critic_rnn_forward.1} parent=0 // pred_region
    _
  $region37: #{actor_critic_rnn_forward.1} parent=0 // pred_fallthru
    _
  // Predicated region
  $region38: #{actor_critic_rnn_forward.1} parent=0 // pred_check
    _
  $region39: #{actor_critic_rnn_forward.1} parent=0 // pred_check_branch
    %1932 = sbr.rel (0) target = $region41
  $region40: #{actor_critic_rnn_forward.1} parent=0 // pred_region
    _
  $region41: #{actor_critic_rnn_forward.1} parent=0 // pred_fallthru
    _
  // Predicated region
  $region42: #{actor_critic_rnn_forward.1} parent=0 // pred_check
    _
  $region43: #{actor_critic_rnn_forward.1} parent=0 // pred_check_branch
    %1934 = sbr.rel (0) target = $region45
  $region44: #{actor_critic_rnn_forward.1} parent=0 // pred_region
    _
  $region45: #{actor_critic_rnn_forward.1} parent=0 // pred_fallthru
    _
  // Predicated region
  $region46: #{actor_critic_rnn_forward.1} parent=0 // pred_check
    _
  $region47: #{actor_critic_rnn_forward.1} parent=0 // pred_check_branch
    %1936 = sbr.rel (0) target = $region49
  $region48: #{actor_critic_rnn_forward.1} parent=0 // pred_region
    _
  $region49: #{actor_critic_rnn_forward.1} parent=0 // pred_fallthru
    _
  // Predicated region
  $region50: #{actor_critic_rnn_forward.1} parent=0 // pred_check
    _
  $region51: #{actor_critic_rnn_forward.1} parent=0 // pred_check_branch
    %1938 = sbr.rel (0) target = $region53
  $region52: #{actor_critic_rnn_forward.1} parent=0 // pred_region
    _
  $region53: #{actor_critic_rnn_forward.1} parent=0 // pred_fallthru
    _
  // Predicated region
  $region54: #{actor_critic_rnn_forward.1} parent=0 // pred_check
    _
  $region55: #{actor_critic_rnn_forward.1} parent=0 // pred_check_branch
    %1940 = sbr.rel (0) target = $region57
  $region56: #{actor_critic_rnn_forward.1} parent=0 // pred_region
    _
  $region57: #{actor_critic_rnn_forward.1} parent=0 // pred_fallthru
    _

</llo_original>
